<compile_context>
chip_gen: v5e
topology: v5e:2x2
jax: 0.10.0
libtpu: 0.0.40
codegen_flags: <defaults>
</compile_context>

<pallas_src>
import functools
import math

import jax
import jax.numpy as jnp
from jax.experimental import pallas as pl
from jax.experimental.pallas import tpu as pltpu

_NEG = -1e30  # finite "minus infinity" for additive masks (avoids inf-inf NaNs)


# ----------------------------------------------------------------------------
# Helpers used inside the kernel
# ----------------------------------------------------------------------------
def _layernorm(x, g, b, eps=1e-5):
    mu = jnp.mean(x, axis=-1, keepdims=True)
    var = jnp.mean((x - mu) ** 2, axis=-1, keepdims=True)
    return (x - mu) * jax.lax.rsqrt(var + eps) * g + b


# ----------------------------------------------------------------------------
# Fused encoder kernel: all layers + final vocab projection in one pallas_call
# grid = (batch_tiles, num_layers); layer axis is "arbitrary" (sequential),
# batch-tile axis is "parallel" (shards across TensorCores on v7x).
# ----------------------------------------------------------------------------
def fused_encoder_kernel(
    pad_ref, x_in_ref,
    w_in_ref, b_in_ref, w_out_ref, b_out_ref, g1_ref, be1_ref,
    w1_ref, b1_ref, w2_ref, b2_ref, g2_ref, be2_ref,
    wv_ref, bv_ref,
    o_ref,
    x_scr, bias_scr, ctx_scr,
    *, num_heads, seq, batch_tile,
):
    layer = pl.program_id(1)
    S = seq
    bt = batch_tile

    # Per batch-tile init: load the (embedded + PE) activation into the
    # resident VMEM accumulator and build the layer-invariant per-sequence
    # attention bias (causal + key padding) ONCE.
    @pl.when(layer == 0)
    def _():
        x_scr[...] = x_in_ref[...]
        r = jax.lax.broadcasted_iota(jnp.int32, (S, S), 0)
        c = jax.lax.broadcasted_iota(jnp.int32, (S, S), 1)
        causal = jnp.where(r >= c, 0.0, _NEG).astype(jnp.float32)   # (S, S)
        bias_scr[...] = causal[None, :, :] + pad_ref[...]           # (bt, S, S)

    x = x_scr[...]                                   # (M, E) f32, M = bt*S
    M, E = x.shape
    hd = E // num_heads
    bias = bias_scr[...]                             # (bt, S, S)

    # ---- fused QKV projection (single MXU pass, contraction K = E) ----------
    xb = x.astype(jnp.bfloat16)
    qkv = jnp.dot(xb, w_in_ref[0],
                  preferred_element_type=jnp.float32) + b_in_ref[0]   # (M, 3E)
    scale = 1.0 / math.sqrt(hd)
    q3 = (qkv[:, :E] * scale).astype(jnp.bfloat16).reshape(bt, S, E)
    k3 = qkv[:, E:2 * E].astype(jnp.bfloat16).reshape(bt, S, E)
    v3 = qkv[:, 2 * E:].astype(jnp.bfloat16).reshape(bt, S, E)

    # ---- per-head attention over per-sequence (S, S) score blocks -----------
    # Context for each head is written into a bf16 VMEM slab at its static
    # lane slot; the output projection is then a single (M, E)@(E, E) matmul.
    for h in range(num_heads):
        sl = slice(h * hd, (h + 1) * hd)
        s = jnp.einsum('bqd,bkd->bqk', q3[:, :, sl], k3[:, :, sl],
                       preferred_element_type=jnp.float32) + bias   # (bt, S, S)
        s = s - jnp.max(s, axis=-1, keepdims=True)
        p = jnp.exp(s)
        p = p * pl.reciprocal(jnp.sum(p, axis=-1, keepdims=True), approx=True)
        ctx = jnp.einsum('bqk,bkd->bqd', p.astype(jnp.bfloat16), v3[:, :, sl],
                         preferred_element_type=jnp.float32)        # (bt, S, hd)
        ctx_scr[:, sl] = ctx.reshape(M, hd).astype(jnp.bfloat16)

    attn = jnp.dot(ctx_scr[...], w_out_ref[0],
                   preferred_element_type=jnp.float32) + b_out_ref[0]

    # ---- residual + norm1 ----------------------------------------------------
    x = _layernorm(x + attn, g1_ref[0], be1_ref[0])

    # ---- feed-forward (Linear -> SiLU -> Linear) -----------------------------
    h1 = jnp.dot(x.astype(jnp.bfloat16), w1_ref[0],
                 preferred_element_type=jnp.float32) + b1_ref[0]
    h1 = h1 * jax.nn.sigmoid(h1)                     # SiLU
    ff = jnp.dot(h1.astype(jnp.bfloat16), w2_ref[0],
                 preferred_element_type=jnp.float32) + b2_ref[0]

    # ---- residual + norm2 ----------------------------------------------------
    x = _layernorm(x + ff, g2_ref[0], be2_ref[0])
    x_scr[...] = x

    # ---- final vocab projection (lane-dense padded V), last layer only -------
    @pl.when(layer == pl.num_programs(1) - 1)
    def _():
        o_ref[...] = (jnp.dot(x.astype(jnp.bfloat16), wv_ref[...],
                              preferred_element_type=jnp.float32)
                      + bv_ref[...]).astype(o_ref.dtype)


# ----------------------------------------------------------------------------
# pallas_call plumbing
# ----------------------------------------------------------------------------
def fused_encoder_pallas(x, pad_bias, params, *, num_heads, batch, seq,
                         batch_tile=None):
    BS, E = x.shape
    assert BS == batch * seq
    L = params["w_in"].shape[0]
    F = params["w1"].shape[2]
    Vp = params["fc1_w"].shape[1]     # padded (lane-dense) vocab width

    if batch_tile is None:
        # >= 2 batch tiles (when possible) so the "parallel" axis can shard
        # across both v7x TensorCores.  On v5e with large per-layer weights,
        # prefer batch_tile = batch (weights streamed once) and/or
        # pipeline_mode=pl.Buffered(3) on the lw() specs.
        batch_tile = batch // 2 if (batch % 2 == 0 and batch >= 2) else batch
    assert batch % batch_tile == 0
    n_bt = batch // batch_tile
    M = batch_tile * seq

    kernel = functools.partial(fused_encoder_kernel, num_heads=num_heads,
                               seq=seq, batch_tile=batch_tile)

    def lw(shape):
        # per-layer stacked tensor: stream one layer slice per "arbitrary" step
        nz = (0,) * len(shape)
        return pl.BlockSpec((1,) + shape, lambda bi, l, nz=nz: (l,) + nz)

    in_specs = [
        pl.BlockSpec((batch_tile, 1, seq), lambda bi, l: (bi, 0, 0)),  # key-pad
        pl.BlockSpec((M, E), lambda bi, l: (bi, 0)),                   # input act
        lw((E, 3 * E)), lw((1, 3 * E)),                                # attn in_proj
        lw((E, E)), lw((1, E)),                                        # attn out_proj
        lw((1, E)), lw((1, E)),                                        # norm1
        lw((E, F)), lw((1, F)),                                        # ffn linear 1
        lw((F, E)), lw((1, E)),                                        # ffn linear 2
        lw((1, E)), lw((1, E)),                                        # norm2
        pl.BlockSpec((E, Vp), lambda bi, l: (0, 0)),                   # fc1 weight
        pl.BlockSpec((1, Vp), lambda bi, l: (0, 0)),                   # fc1 bias
    ]

    return pl.pallas_call(
        kernel,
        out_shape=jax.ShapeDtypeStruct((BS, Vp), jnp.float32),
        grid=(n_bt, L),
        in_specs=in_specs,
        out_specs=pl.BlockSpec((M, Vp), lambda bi, l: (bi, 0)),
        scratch_shapes=[
            pltpu.VMEM((M, E), jnp.float32),                 # resident activation
            pltpu.VMEM((batch_tile, seq, seq), jnp.float32), # hoisted attn bias
            pltpu.VMEM((M, E), jnp.bfloat16),                # per-head ctx slab
        ],
        compiler_params=pltpu.CompilerParams(
            dimension_semantics=("parallel", "arbitrary"),
            vmem_limit_bytes=32 * 1024 * 1024,   # explicit; fits v5e/v6e/v7x
        ),
    )(pad_bias, x,
      params["w_in"], params["b_in"], params["w_out"], params["b_out"],
      params["g1"], params["be1"], params["w1"], params["b1"],
      params["w2"], params["b2"], params["g2"], params["be2"],
      params["fc1_w"], params["fc1_b"])


# ----------------------------------------------------------------------------
# Full model forward (tiny embedding/PE glue in plain JAX, hot path in Pallas)
# ----------------------------------------------------------------------------
def transformer_model_forward(src, params, num_heads):
    B, S = src.shape
    V, E = params["emb"].shape

    # nn.Embedding(max_norm=1.0): looked-up rows renormalized to norm <= 1.
    # TODO(synk): PyTorch also mutates the embedding weight in place; only the
    # forward-output numerics are reproduced here.
    rows = params["emb"][src]                                   # (B, S, E)
    norms = jnp.linalg.norm(rows, axis=-1, keepdims=True)
    rows = jnp.where(norms > 1.0, rows / (norms + 1e-7), rows)

    # Positional encoding (all dropout layers are identity in eval mode).
    x = (rows + params["pe"][None, :S, :]).astype(jnp.float32).reshape(B * S, E)

    # Key-padding bias (0 for real tokens, -1e30 for pad token id 0),
    # shaped (B, 1, S) so it is indexed per batch tile inside the kernel.
    pad_bias = jnp.where(src[:, None, :] == 0, _NEG, 0.0).astype(jnp.float32)

    logits = fused_encoder_pallas(x, pad_bias, params,
                                  num_heads=num_heads, batch=B, seq=S)
    return logits[:, :V].reshape(B, S, V)       # drop lane-padding columns


# ----------------------------------------------------------------------------
# Deterministic parameter construction (layer-stacked, bf16 matmul weights)
# ----------------------------------------------------------------------------
def _xavier_uniform(key, shape):
    fan_out, fan_in = shape      # PyTorch Linear weight layout: (out, in)
    limit = math.sqrt(6.0 / (fan_in + fan_out))
    return jax.random.uniform(key, shape, jnp.float32, -limit, limit)


def _positional_encoding(d_model, max_len):
    position = jnp.arange(max_len, dtype=jnp.float32)[:, None]
    div_term = jnp.exp(jnp.arange(0, d_model, 2, dtype=jnp.float32)
                       * (-math.log(10000.0) / d_model))
    pe = jnp.zeros((max_len, d_model), dtype=jnp.float32)
    pe = pe.at[:, 0::2].set(jnp.sin(position * div_term))
    pe = pe.at[:, 1::2].set(jnp.cos(position * div_term))
    return pe


def init_params(key, vocab_size, embed_dim, num_layers, max_len):
    E = embed_dim
    F = embed_dim   # encoder is built with ff_hidden_dim = embed_dim
    L = num_layers
    V_pad = ((vocab_size + 127) // 128) * 128   # lane-dense logits store
    keys = jax.random.split(key, 2 + 4 * num_layers)

    w_in, w_out, w1, w2 = [], [], [], []
    for l in range(num_layers):
        k0, k1, k2, k3 = keys[2 + 4 * l: 6 + 4 * l]
        w_in.append(_xavier_uniform(k0, (3 * E, E)).T)    # (E, 3E)
        w_out.append(_xavier_uniform(k1, (E, E)).T)       # (E, E)
        w1.append(_xavier_uniform(k2, (F, E)).T)          # (E, F)
        w2.append(_xavier_uniform(k3, (E, F)).T)          # (F, E)

    fc1 = _xavier_uniform(keys[1], (vocab_size, E)).T     # (E, V)
    fc1_w = jnp.zeros((E, V_pad), jnp.float32).at[:, :vocab_size].set(fc1)

    params = {
        "emb": jax.random.normal(keys[0], (vocab_size, E), jnp.float32),
        "pe": _positional_encoding(E, max_len),
        # matmul weights stored in bf16 (f32 accumulation in-kernel)
        "fc1_w": fc1_w.astype(jnp.bfloat16),               # (E, V_pad)
        "fc1_b": jnp.zeros((1, V_pad), jnp.float32),
        "w_in": jnp.stack(w_in).astype(jnp.bfloat16),      # (L, E, 3E)
        "b_in": jnp.zeros((L, 1, 3 * E), jnp.float32),
        "w_out": jnp.stack(w_out).astype(jnp.bfloat16),    # (L, E, E)
        "b_out": jnp.zeros((L, 1, E), jnp.float32),
        "g1": jnp.ones((L, 1, E), jnp.float32),
        "be1": jnp.zeros((L, 1, E), jnp.float32),
        "w1": jnp.stack(w1).astype(jnp.bfloat16),          # (L, E, F)
        "b1": jnp.zeros((L, 1, F), jnp.float32),
        "w2": jnp.stack(w2).astype(jnp.bfloat16),          # (L, F, E)
        "b2": jnp.zeros((L, 1, E), jnp.float32),
        "g2": jnp.ones((L, 1, E), jnp.float32),
        "be2": jnp.zeros((L, 1, E), jnp.float32),
    }
    return params


# ----------------------------------------------------------------------------
if __name__ == "__main__":
    # Small, module-consistent shapes.
    VOCAB = 64
    EMBED = 32
    HEADS = 4
    LAYERS = 2
    MAX_LEN = 64
    BATCH = 2
    SEQ = 8
    # TODO(synk): dropout is stochastic in train mode; implemented as eval-mode identity.

    key = jax.random.PRNGKey(0)
    pkey, dkey = jax.random.split(key)
    params = init_params(pkey, VOCAB, EMBED, LAYERS, MAX_LEN)

    # Tokens in [1, VOCAB) so no fully-masked (all-pad) rows, matching the
    # PyTorch module's behaviour on non-degenerate inputs.
    src = jax.random.randint(dkey, (BATCH, SEQ), 1, VOCAB, dtype=jnp.int32)

    fwd = jax.jit(functools.partial(transformer_model_forward, num_heads=HEADS))
    logits = fwd(src, params)
    jax.block_until_ready(logits)

    assert logits.shape == (BATCH, SEQ, VOCAB)
    assert bool(jnp.all(jnp.isfinite(logits)))
    print("KERNEL_OK")
</pallas_src>

<mosaic_0001>
module attributes {stable_mosaic.version = 11 : i64} {
  func.func @fused_encoder_kernel(%arg0: i32, %arg1: i32, %arg2: memref<1x1x8xf32, #tpu.memory_space<vmem>>, %arg3: memref<8x32xf32, #tpu.memory_space<vmem>>, %arg4: memref<1x32x96xbf16, #tpu.memory_space<vmem>>, %arg5: memref<1x1x96xf32, #tpu.memory_space<vmem>>, %arg6: memref<1x32x32xbf16, #tpu.memory_space<vmem>>, %arg7: memref<1x1x32xf32, #tpu.memory_space<vmem>>, %arg8: memref<1x1x32xf32, #tpu.memory_space<vmem>>, %arg9: memref<1x1x32xf32, #tpu.memory_space<vmem>>, %arg10: memref<1x32x32xbf16, #tpu.memory_space<vmem>>, %arg11: memref<1x1x32xf32, #tpu.memory_space<vmem>>, %arg12: memref<1x32x32xbf16, #tpu.memory_space<vmem>>, %arg13: memref<1x1x32xf32, #tpu.memory_space<vmem>>, %arg14: memref<1x1x32xf32, #tpu.memory_space<vmem>>, %arg15: memref<1x1x32xf32, #tpu.memory_space<vmem>>, %arg16: memref<32x128xbf16, #tpu.memory_space<vmem>>, %arg17: memref<1x128xf32, #tpu.memory_space<vmem>>, %arg18: memref<8x128xf32, #tpu.memory_space<vmem>>, %arg19: memref<8x32xf32, #tpu.memory_space<vmem>>, %arg20: memref<1x8x8xf32, #tpu.memory_space<vmem>>, %arg21: memref<8x32xbf16, #tpu.memory_space<vmem>>) attributes {dimension_semantics = [#tpu.dimension_semantics<parallel>, #tpu.dimension_semantics<arbitrary>], iteration_bounds = array<i64: 2, 2>, scalar_prefetch = 0 : i64, scratch_operands = 3 : i64, tpu.core_type = #tpu.core_type<tc>, window_params = [{transform_indices = @transform_0, window_bounds = array<i64: 1, 1, 8>}, {transform_indices = @transform_1, window_bounds = array<i64: 8, 32>}, {transform_indices = @transform_2, window_bounds = array<i64: 1, 32, 96>}, {transform_indices = @transform_3, window_bounds = array<i64: 1, 1, 96>}, {transform_indices = @transform_4, window_bounds = array<i64: 1, 32, 32>}, {transform_indices = @transform_5, window_bounds = array<i64: 1, 1, 32>}, {transform_indices = @transform_6, window_bounds = array<i64: 1, 1, 32>}, {transform_indices = @transform_7, window_bounds = array<i64: 1, 1, 32>}, {transform_indices = @transform_8, window_bounds = array<i64: 1, 32, 32>}, {transform_indices = @transform_9, window_bounds = array<i64: 1, 1, 32>}, {transform_indices = @transform_10, window_bounds = array<i64: 1, 32, 32>}, {transform_indices = @transform_11, window_bounds = array<i64: 1, 1, 32>}, {transform_indices = @transform_12, window_bounds = array<i64: 1, 1, 32>}, {transform_indices = @transform_13, window_bounds = array<i64: 1, 1, 32>}, {pipeline_mode = #tpu.pipeline_mode<synchronous>, transform_indices = @transform_14, window_bounds = array<i64: 32, 128>}, {pipeline_mode = #tpu.pipeline_mode<synchronous>, transform_indices = @transform_15, window_bounds = array<i64: 1, 128>}, {transform_indices = @transform_16, window_bounds = array<i64: 8, 128>}]} {
    %c0_i32 = arith.constant 0 : i32
    %0 = arith.cmpi eq, %arg1, %c0_i32 : i32
    %1 = arith.extui %0 : i1 to i32
    %c0_i32_0 = arith.constant 0 : i32
    %2 = arith.cmpi ne, %1, %c0_i32_0 : i32
    scf.if %2 {
      %c0_82 = arith.constant 0 : index
      %c0_83 = arith.constant 0 : index
      %192 = vector.load %arg3[%c0_82, %c0_83] : memref<8x32xf32, #tpu.memory_space<vmem>>, vector<8x32xf32>
      %c0_84 = arith.constant 0 : index
      %c0_85 = arith.constant 0 : index
      %193 = vector.load %arg19[%c0_84, %c0_85] : memref<8x32xf32, #tpu.memory_space<vmem>>, vector<8x32xf32>
      tpu.vector_store %arg19[%c0_84, %c0_85], %192 {strides = array<i32>} : memref<8x32xf32, #tpu.memory_space<vmem>>, vector<8x32xf32>,
      %194 = tpu.iota {dimensions = array<i32: 0>} : vector<8x8xi32>
      %195 = tpu.iota {dimensions = array<i32: 1>} : vector<8x8xi32>
      %196 = arith.cmpi sge, %194, %195 : vector<8x8xi32>
      %cst_86 = arith.constant 0.000000e+00 : f32
      %cst_87 = arith.constant -1.000000e+30 : f32
      %197 = vector.broadcast %cst_86 : f32 to vector<8x8xf32>
      %198 = vector.broadcast %cst_87 : f32 to vector<8x8xf32>
      %199 = arith.select %196, %197, %198 : vector<8x8xi1>, vector<8x8xf32>
      %200 = vector.shape_cast %199 : vector<8x8xf32> to vector<1x8x8xf32>
      %c0_88 = arith.constant 0 : index
      %c0_89 = arith.constant 0 : index
      %c0_90 = arith.constant 0 : index
      %201 = vector.load %arg2[%c0_88, %c0_89, %c0_90] : memref<1x1x8xf32, #tpu.memory_space<vmem>>, vector<1x1x8xf32>
      %202 = vector.broadcast %201 : vector<1x1x8xf32> to vector<1x8x8xf32>
      %203 = arith.addf %200, %202 : vector<1x8x8xf32>
      %c0_91 = arith.constant 0 : index
      %c0_92 = arith.constant 0 : index
      %c0_93 = arith.constant 0 : index
      %204 = vector.load %arg20[%c0_91, %c0_92, %c0_93] : memref<1x8x8xf32, #tpu.memory_space<vmem>>, vector<1x8x8xf32>
      tpu.vector_store %arg20[%c0_91, %c0_92, %c0_93], %203 {strides = array<i32>} : memref<1x8x8xf32, #tpu.memory_space<vmem>>, vector<1x8x8xf32>,
    } else {
    }
    %c0 = arith.constant 0 : index
    %c0_1 = arith.constant 0 : index
    %3 = vector.load %arg19[%c0, %c0_1] : memref<8x32xf32, #tpu.memory_space<vmem>>, vector<8x32xf32>
    %c0_2 = arith.constant 0 : index
    %c0_3 = arith.constant 0 : index
    %c0_4 = arith.constant 0 : index
    %4 = vector.load %arg20[%c0_2, %c0_3, %c0_4] : memref<1x8x8xf32, #tpu.memory_space<vmem>>, vector<1x8x8xf32>
    %5 = arith.truncf %3 : vector<8x32xf32> to vector<8x32xbf16>
    %c0_5 = arith.constant 0 : index
    %c0_6 = arith.constant 0 : index
    %c0_7 = arith.constant 0 : index
    %6 = vector.load %arg4[%c0_5, %c0_6, %c0_7] : memref<1x32x96xbf16, #tpu.memory_space<vmem>>, vector<1x32x96xbf16>
    %7 = vector.shape_cast %6 : vector<1x32x96xbf16> to vector<32x96xbf16>
    %cst = arith.constant dense<0.000000e+00> : vector<8x96xf32>
    %8 = tpu.matmul %5, %7, %cst {dimension_numbers = #tpu.dot_dimension_numbers<[1], [0], [0], [1], [0, 0, 1, 1], [], []>} : vector<8x32xbf16>, vector<32x96xbf16>, vector<8x96xf32> -> vector<8x96xf32>
    %c0_8 = arith.constant 0 : index
    %c0_9 = arith.constant 0 : index
    %c0_10 = arith.constant 0 : index
    %9 = vector.load %arg5[%c0_8, %c0_9, %c0_10] : memref<1x1x96xf32, #tpu.memory_space<vmem>>, vector<1x1x96xf32>
    %10 = vector.shape_cast %9 : vector<1x1x96xf32> to vector<1x96xf32>
    %11 = vector.broadcast %10 : vector<1x96xf32> to vector<8x96xf32>
    %12 = arith.addf %8, %11 : vector<8x96xf32>
    %13 = vector.extract_strided_slice %12 {offsets = [0, 0], sizes = [8, 32], strides = [1, 1]} : vector<8x96xf32> to vector<8x32xf32>
    %cst_11 = arith.constant 0.353553385 : f32
    %14 = vector.broadcast %cst_11 : f32 to vector<8x32xf32>
    %15 = arith.mulf %13, %14 : vector<8x32xf32>
    %16 = arith.truncf %15 : vector<8x32xf32> to vector<8x32xbf16>
    %17 = vector.shape_cast %16 : vector<8x32xbf16> to vector<1x8x32xbf16>
    %18 = vector.extract_strided_slice %12 {offsets = [0, 32], sizes = [8, 32], strides = [1, 1]} : vector<8x96xf32> to vector<8x32xf32>
    %19 = arith.truncf %18 : vector<8x32xf32> to vector<8x32xbf16>
    %20 = vector.shape_cast %19 : vector<8x32xbf16> to vector<1x8x32xbf16>
    %21 = vector.extract_strided_slice %12 {offsets = [0, 64], sizes = [8, 32], strides = [1, 1]} : vector<8x96xf32> to vector<8x32xf32>
    %22 = arith.truncf %21 : vector<8x32xf32> to vector<8x32xbf16>
    %23 = vector.shape_cast %22 : vector<8x32xbf16> to vector<1x8x32xbf16>
    %24 = vector.extract_strided_slice %17 {offsets = [0, 0, 0], sizes = [1, 8, 8], strides = [1, 1, 1]} : vector<1x8x32xbf16> to vector<1x8x8xbf16>
    %25 = vector.extract_strided_slice %20 {offsets = [0, 0, 0], sizes = [1, 8, 8], strides = [1, 1, 1]} : vector<1x8x32xbf16> to vector<1x8x8xbf16>
    "tpu.trace_start"() <{level = 10 : i32, message = "bqd,bkd->bqk"}> : () -> ()
    %cst_12 = arith.constant dense<0.000000e+00> : vector<1x8x8xf32>
    %26 = tpu.matmul %24, %25, %cst_12 {dimension_numbers = #tpu.dot_dimension_numbers<[2], [2], [1], [1], [0, 0, 0, 1, 1, 1], [0], [0]>} : vector<1x8x8xbf16>, vector<1x8x8xbf16>, vector<1x8x8xf32> -> vector<1x8x8xf32>
    "tpu.trace_stop"() : () -> ()
    %27 = arith.addf %26, %4 : vector<1x8x8xf32>
    %cst_13 = arith.constant dense<0xFF800000> : vector<1x8xf32>
    %28 = vector.multi_reduction <maximumf>, %27, %cst_13 [2] : vector<1x8x8xf32> to vector<1x8xf32>
    %29 = vector.shape_cast %28 : vector<1x8xf32> to vector<1x8x1xf32>
    %30 = vector.broadcast %29 : vector<1x8x1xf32> to vector<1x8x8xf32>
    %31 = arith.subf %27, %30 : vector<1x8x8xf32>
    %32 = math.exp %31 : vector<1x8x8xf32>
    %cst_14 = arith.constant dense<0.000000e+00> : vector<1x8xf32>
    %33 = vector.multi_reduction <add>, %32, %cst_14 [2] : vector<1x8x8xf32> to vector<1x8xf32>
    %34 = vector.shape_cast %33 : vector<1x8xf32> to vector<1x8x1xf32>
    %35 = tpu.reciprocal %34 {approx = true} : vector<1x8x1xf32> -> vector<1x8x1xf32>
    %36 = vector.broadcast %35 : vector<1x8x1xf32> to vector<1x8x8xf32>
    %37 = arith.mulf %32, %36 : vector<1x8x8xf32>
    %38 = arith.truncf %37 : vector<1x8x8xf32> to vector<1x8x8xbf16>
    %39 = vector.extract_strided_slice %23 {offsets = [0, 0, 0], sizes = [1, 8, 8], strides = [1, 1, 1]} : vector<1x8x32xbf16> to vector<1x8x8xbf16>
    "tpu.trace_start"() <{level = 10 : i32, message = "bqk,bkd->bqd"}> : () -> ()
    %cst_15 = arith.constant dense<0.000000e+00> : vector<1x8x8xf32>
    %40 = tpu.matmul %38, %39, %cst_15 {dimension_numbers = #tpu.dot_dimension_numbers<[2], [1], [1], [2], [0, 0, 0, 1, 1, 2], [0], [0]>} : vector<1x8x8xbf16>, vector<1x8x8xbf16>, vector<1x8x8xf32> -> vector<1x8x8xf32>
    "tpu.trace_stop"() : () -> ()
    %41 = vector.shape_cast %40 : vector<1x8x8xf32> to vector<8x8xf32>
    %42 = arith.truncf %41 : vector<8x8xf32> to vector<8x8xbf16>
    %c0_16 = arith.constant 0 : index
    %c0_17 = arith.constant 0 : index
    %43 = vector.load %arg21[%c0_16, %c0_17] : memref<8x32xbf16, #tpu.memory_space<vmem>>, vector<8x8xbf16>
    tpu.vector_store %arg21[%c0_16, %c0_17], %42 {strides = array<i32>} : memref<8x32xbf16, #tpu.memory_space<vmem>>, vector<8x8xbf16>,
    %44 = vector.extract_strided_slice %17 {offsets = [0, 0, 8], sizes = [1, 8, 8], strides = [1, 1, 1]} : vector<1x8x32xbf16> to vector<1x8x8xbf16>
    %45 = vector.extract_strided_slice %20 {offsets = [0, 0, 8], sizes = [1, 8, 8], strides = [1, 1, 1]} : vector<1x8x32xbf16> to vector<1x8x8xbf16>
    "tpu.trace_start"() <{level = 10 : i32, message = "bqd,bkd->bqk"}> : () -> ()
    %cst_18 = arith.constant dense<0.000000e+00> : vector<1x8x8xf32>
    %46 = tpu.matmul %44, %45, %cst_18 {dimension_numbers = #tpu.dot_dimension_numbers<[2], [2], [1], [1], [0, 0, 0, 1, 1, 1], [0], [0]>} : vector<1x8x8xbf16>, vector<1x8x8xbf16>, vector<1x8x8xf32> -> vector<1x8x8xf32>
    "tpu.trace_stop"() : () -> ()
    %47 = arith.addf %46, %4 : vector<1x8x8xf32>
    %cst_19 = arith.constant dense<0xFF800000> : vector<1x8xf32>
    %48 = vector.multi_reduction <maximumf>, %47, %cst_19 [2] : vector<1x8x8xf32> to vector<1x8xf32>
    %49 = vector.shape_cast %48 : vector<1x8xf32> to vector<1x8x1xf32>
    %50 = vector.broadcast %49 : vector<1x8x1xf32> to vector<1x8x8xf32>
    %51 = arith.subf %47, %50 : vector<1x8x8xf32>
    %52 = math.exp %51 : vector<1x8x8xf32>
    %cst_20 = arith.constant dense<0.000000e+00> : vector<1x8xf32>
    %53 = vector.multi_reduction <add>, %52, %cst_20 [2] : vector<1x8x8xf32> to vector<1x8xf32>
    %54 = vector.shape_cast %53 : vector<1x8xf32> to vector<1x8x1xf32>
    %55 = tpu.reciprocal %54 {approx = true} : vector<1x8x1xf32> -> vector<1x8x1xf32>
    %56 = vector.broadcast %55 : vector<1x8x1xf32> to vector<1x8x8xf32>
    %57 = arith.mulf %52, %56 : vector<1x8x8xf32>
    %58 = arith.truncf %57 : vector<1x8x8xf32> to vector<1x8x8xbf16>
    %59 = vector.extract_strided_slice %23 {offsets = [0, 0, 8], sizes = [1, 8, 8], strides = [1, 1, 1]} : vector<1x8x32xbf16> to vector<1x8x8xbf16>
    "tpu.trace_start"() <{level = 10 : i32, message = "bqk,bkd->bqd"}> : () -> ()
    %cst_21 = arith.constant dense<0.000000e+00> : vector<1x8x8xf32>
    %60 = tpu.matmul %58, %59, %cst_21 {dimension_numbers = #tpu.dot_dimension_numbers<[2], [1], [1], [2], [0, 0, 0, 1, 1, 2], [0], [0]>} : vector<1x8x8xbf16>, vector<1x8x8xbf16>, vector<1x8x8xf32> -> vector<1x8x8xf32>
    "tpu.trace_stop"() : () -> ()
    %61 = vector.shape_cast %60 : vector<1x8x8xf32> to vector<8x8xf32>
    %62 = arith.truncf %61 : vector<8x8xf32> to vector<8x8xbf16>
    %c0_22 = arith.constant 0 : index
    %c8 = arith.constant 8 : index
    %63 = vector.load %arg21[%c0_22, %c8] : memref<8x32xbf16, #tpu.memory_space<vmem>>, vector<8x8xbf16>
    tpu.vector_store %arg21[%c0_22, %c8], %62 {strides = array<i32>} : memref<8x32xbf16, #tpu.memory_space<vmem>>, vector<8x8xbf16>,
    %64 = vector.extract_strided_slice %17 {offsets = [0, 0, 16], sizes = [1, 8, 8], strides = [1, 1, 1]} : vector<1x8x32xbf16> to vector<1x8x8xbf16>
    %65 = vector.extract_strided_slice %20 {offsets = [0, 0, 16], sizes = [1, 8, 8], strides = [1, 1, 1]} : vector<1x8x32xbf16> to vector<1x8x8xbf16>
    "tpu.trace_start"() <{level = 10 : i32, message = "bqd,bkd->bqk"}> : () -> ()
    %cst_23 = arith.constant dense<0.000000e+00> : vector<1x8x8xf32>
    %66 = tpu.matmul %64, %65, %cst_23 {dimension_numbers = #tpu.dot_dimension_numbers<[2], [2], [1], [1], [0, 0, 0, 1, 1, 1], [0], [0]>} : vector<1x8x8xbf16>, vector<1x8x8xbf16>, vector<1x8x8xf32> -> vector<1x8x8xf32>
    "tpu.trace_stop"() : () -> ()
    %67 = arith.addf %66, %4 : vector<1x8x8xf32>
    %cst_24 = arith.constant dense<0xFF800000> : vector<1x8xf32>
    %68 = vector.multi_reduction <maximumf>, %67, %cst_24 [2] : vector<1x8x8xf32> to vector<1x8xf32>
    %69 = vector.shape_cast %68 : vector<1x8xf32> to vector<1x8x1xf32>
    %70 = vector.broadcast %69 : vector<1x8x1xf32> to vector<1x8x8xf32>
    %71 = arith.subf %67, %70 : vector<1x8x8xf32>
    %72 = math.exp %71 : vector<1x8x8xf32>
    %cst_25 = arith.constant dense<0.000000e+00> : vector<1x8xf32>
    %73 = vector.multi_reduction <add>, %72, %cst_25 [2] : vector<1x8x8xf32> to vector<1x8xf32>
    %74 = vector.shape_cast %73 : vector<1x8xf32> to vector<1x8x1xf32>
    %75 = tpu.reciprocal %74 {approx = true} : vector<1x8x1xf32> -> vector<1x8x1xf32>
    %76 = vector.broadcast %75 : vector<1x8x1xf32> to vector<1x8x8xf32>
    %77 = arith.mulf %72, %76 : vector<1x8x8xf32>
    %78 = arith.truncf %77 : vector<1x8x8xf32> to vector<1x8x8xbf16>
    %79 = vector.extract_strided_slice %23 {offsets = [0, 0, 16], sizes = [1, 8, 8], strides = [1, 1, 1]} : vector<1x8x32xbf16> to vector<1x8x8xbf16>
    "tpu.trace_start"() <{level = 10 : i32, message = "bqk,bkd->bqd"}> : () -> ()
    %cst_26 = arith.constant dense<0.000000e+00> : vector<1x8x8xf32>
    %80 = tpu.matmul %78, %79, %cst_26 {dimension_numbers = #tpu.dot_dimension_numbers<[2], [1], [1], [2], [0, 0, 0, 1, 1, 2], [0], [0]>} : vector<1x8x8xbf16>, vector<1x8x8xbf16>, vector<1x8x8xf32> -> vector<1x8x8xf32>
    "tpu.trace_stop"() : () -> ()
    %81 = vector.shape_cast %80 : vector<1x8x8xf32> to vector<8x8xf32>
    %82 = arith.truncf %81 : vector<8x8xf32> to vector<8x8xbf16>
    %c0_27 = arith.constant 0 : index
    %c16 = arith.constant 16 : index
    %83 = vector.load %arg21[%c0_27, %c16] : memref<8x32xbf16, #tpu.memory_space<vmem>>, vector<8x8xbf16>
    tpu.vector_store %arg21[%c0_27, %c16], %82 {strides = array<i32>} : memref<8x32xbf16, #tpu.memory_space<vmem>>, vector<8x8xbf16>,
    %84 = vector.extract_strided_slice %17 {offsets = [0, 0, 24], sizes = [1, 8, 8], strides = [1, 1, 1]} : vector<1x8x32xbf16> to vector<1x8x8xbf16>
    %85 = vector.extract_strided_slice %20 {offsets = [0, 0, 24], sizes = [1, 8, 8], strides = [1, 1, 1]} : vector<1x8x32xbf16> to vector<1x8x8xbf16>
    "tpu.trace_start"() <{level = 10 : i32, message = "bqd,bkd->bqk"}> : () -> ()
    %cst_28 = arith.constant dense<0.000000e+00> : vector<1x8x8xf32>
    %86 = tpu.matmul %84, %85, %cst_28 {dimension_numbers = #tpu.dot_dimension_numbers<[2], [2], [1], [1], [0, 0, 0, 1, 1, 1], [0], [0]>} : vector<1x8x8xbf16>, vector<1x8x8xbf16>, vector<1x8x8xf32> -> vector<1x8x8xf32>
    "tpu.trace_stop"() : () -> ()
    %87 = arith.addf %86, %4 : vector<1x8x8xf32>
    %cst_29 = arith.constant dense<0xFF800000> : vector<1x8xf32>
    %88 = vector.multi_reduction <maximumf>, %87, %cst_29 [2] : vector<1x8x8xf32> to vector<1x8xf32>
    %89 = vector.shape_cast %88 : vector<1x8xf32> to vector<1x8x1xf32>
    %90 = vector.broadcast %89 : vector<1x8x1xf32> to vector<1x8x8xf32>
    %91 = arith.subf %87, %90 : vector<1x8x8xf32>
    %92 = math.exp %91 : vector<1x8x8xf32>
    %cst_30 = arith.constant dense<0.000000e+00> : vector<1x8xf32>
    %93 = vector.multi_reduction <add>, %92, %cst_30 [2] : vector<1x8x8xf32> to vector<1x8xf32>
    %94 = vector.shape_cast %93 : vector<1x8xf32> to vector<1x8x1xf32>
    %95 = tpu.reciprocal %94 {approx = true} : vector<1x8x1xf32> -> vector<1x8x1xf32>
    %96 = vector.broadcast %95 : vector<1x8x1xf32> to vector<1x8x8xf32>
    %97 = arith.mulf %92, %96 : vector<1x8x8xf32>
    %98 = arith.truncf %97 : vector<1x8x8xf32> to vector<1x8x8xbf16>
    %99 = vector.extract_strided_slice %23 {offsets = [0, 0, 24], sizes = [1, 8, 8], strides = [1, 1, 1]} : vector<1x8x32xbf16> to vector<1x8x8xbf16>
    "tpu.trace_start"() <{level = 10 : i32, message = "bqk,bkd->bqd"}> : () -> ()
    %cst_31 = arith.constant dense<0.000000e+00> : vector<1x8x8xf32>
    %100 = tpu.matmul %98, %99, %cst_31 {dimension_numbers = #tpu.dot_dimension_numbers<[2], [1], [1], [2], [0, 0, 0, 1, 1, 2], [0], [0]>} : vector<1x8x8xbf16>, vector<1x8x8xbf16>, vector<1x8x8xf32> -> vector<1x8x8xf32>
    "tpu.trace_stop"() : () -> ()
    %101 = vector.shape_cast %100 : vector<1x8x8xf32> to vector<8x8xf32>
    %102 = arith.truncf %101 : vector<8x8xf32> to vector<8x8xbf16>
    %c0_32 = arith.constant 0 : index
    %c24 = arith.constant 24 : index
    %103 = vector.load %arg21[%c0_32, %c24] : memref<8x32xbf16, #tpu.memory_space<vmem>>, vector<8x8xbf16>
    tpu.vector_store %arg21[%c0_32, %c24], %102 {strides = array<i32>} : memref<8x32xbf16, #tpu.memory_space<vmem>>, vector<8x8xbf16>,
    %c0_33 = arith.constant 0 : index
    %c0_34 = arith.constant 0 : index
    %104 = vector.load %arg21[%c0_33, %c0_34] : memref<8x32xbf16, #tpu.memory_space<vmem>>, vector<8x32xbf16>
    %c0_35 = arith.constant 0 : index
    %c0_36 = arith.constant 0 : index
    %c0_37 = arith.constant 0 : index
    %105 = vector.load %arg6[%c0_35, %c0_36, %c0_37] : memref<1x32x32xbf16, #tpu.memory_space<vmem>>, vector<1x32x32xbf16>
    %106 = vector.shape_cast %105 : vector<1x32x32xbf16> to vector<32x32xbf16>
    %cst_38 = arith.constant dense<0.000000e+00> : vector<8x32xf32>
    %107 = tpu.matmul %104, %106, %cst_38 {dimension_numbers = #tpu.dot_dimension_numbers<[1], [0], [0], [1], [0, 0, 1, 1], [], []>} : vector<8x32xbf16>, vector<32x32xbf16>, vector<8x32xf32> -> vector<8x32xf32>
    %c0_39 = arith.constant 0 : index
    %c0_40 = arith.constant 0 : index
    %c0_41 = arith.constant 0 : index
    %108 = vector.load %arg7[%c0_39, %c0_40, %c0_41] : memref<1x1x32xf32, #tpu.memory_space<vmem>>, vector<1x1x32xf32>
    %109 = vector.shape_cast %108 : vector<1x1x32xf32> to vector<1x32xf32>
    %110 = vector.broadcast %109 : vector<1x32xf32> to vector<8x32xf32>
    %111 = arith.addf %107, %110 : vector<8x32xf32>
    %112 = arith.addf %3, %111 : vector<8x32xf32>
    %c0_42 = arith.constant 0 : index
    %c0_43 = arith.constant 0 : index
    %c0_44 = arith.constant 0 : index
    %113 = vector.load %arg8[%c0_42, %c0_43, %c0_44] : memref<1x1x32xf32, #tpu.memory_space<vmem>>, vector<1x1x32xf32>
    %114 = vector.shape_cast %113 : vector<1x1x32xf32> to vector<1x32xf32>
    %c0_45 = arith.constant 0 : index
    %c0_46 = arith.constant 0 : index
    %c0_47 = arith.constant 0 : index
    %115 = vector.load %arg9[%c0_45, %c0_46, %c0_47] : memref<1x1x32xf32, #tpu.memory_space<vmem>>, vector<1x1x32xf32>
    %116 = vector.shape_cast %115 : vector<1x1x32xf32> to vector<1x32xf32>
    %cst_48 = arith.constant dense<0.000000e+00> : vector<8xf32>
    %117 = vector.multi_reduction <add>, %112, %cst_48 [1] : vector<8x32xf32> to vector<8xf32>
    %118 = vector.shape_cast %117 : vector<8xf32> to vector<8x1xf32>
    %cst_49 = arith.constant 3.200000e+01 : f32
    %119 = vector.broadcast %cst_49 : f32 to vector<8x1xf32>
    %120 = arith.divf %118, %119 : vector<8x1xf32>
    %121 = vector.broadcast %120 : vector<8x1xf32> to vector<8x32xf32>
    %122 = arith.subf %112, %121 : vector<8x32xf32>
    %123 = arith.mulf %122, %122 : vector<8x32xf32>
    %cst_50 = arith.constant dense<0.000000e+00> : vector<8xf32>
    %124 = vector.multi_reduction <add>, %123, %cst_50 [1] : vector<8x32xf32> to vector<8xf32>
    %125 = vector.shape_cast %124 : vector<8xf32> to vector<8x1xf32>
    %cst_51 = arith.constant 3.200000e+01 : f32
    %126 = vector.broadcast %cst_51 : f32 to vector<8x1xf32>
    %127 = arith.divf %125, %126 : vector<8x1xf32>
    %128 = vector.broadcast %120 : vector<8x1xf32> to vector<8x32xf32>
    %129 = arith.subf %112, %128 : vector<8x32xf32>
    %cst_52 = arith.constant 9.99999974E-6 : f32
    %130 = vector.broadcast %cst_52 : f32 to vector<8x1xf32>
    %131 = arith.addf %127, %130 : vector<8x1xf32>
    %132 = math.rsqrt %131 : vector<8x1xf32>
    %133 = vector.broadcast %132 : vector<8x1xf32> to vector<8x32xf32>
    %134 = arith.mulf %129, %133 : vector<8x32xf32>
    %135 = vector.broadcast %114 : vector<1x32xf32> to vector<8x32xf32>
    %136 = arith.mulf %134, %135 : vector<8x32xf32>
    %137 = vector.broadcast %116 : vector<1x32xf32> to vector<8x32xf32>
    %138 = arith.addf %136, %137 : vector<8x32xf32>
    %139 = arith.truncf %138 : vector<8x32xf32> to vector<8x32xbf16>
    %c0_53 = arith.constant 0 : index
    %c0_54 = arith.constant 0 : index
    %c0_55 = arith.constant 0 : index
    %140 = vector.load %arg10[%c0_53, %c0_54, %c0_55] : memref<1x32x32xbf16, #tpu.memory_space<vmem>>, vector<1x32x32xbf16>
    %141 = vector.shape_cast %140 : vector<1x32x32xbf16> to vector<32x32xbf16>
    %cst_56 = arith.constant dense<0.000000e+00> : vector<8x32xf32>
    %142 = tpu.matmul %139, %141, %cst_56 {dimension_numbers = #tpu.dot_dimension_numbers<[1], [0], [0], [1], [0, 0, 1, 1], [], []>} : vector<8x32xbf16>, vector<32x32xbf16>, vector<8x32xf32> -> vector<8x32xf32>
    %c0_57 = arith.constant 0 : index
    %c0_58 = arith.constant 0 : index
    %c0_59 = arith.constant 0 : index
    %143 = vector.load %arg11[%c0_57, %c0_58, %c0_59] : memref<1x1x32xf32, #tpu.memory_space<vmem>>, vector<1x1x32xf32>
    %144 = vector.shape_cast %143 : vector<1x1x32xf32> to vector<1x32xf32>
    %145 = vector.broadcast %144 : vector<1x32xf32> to vector<8x32xf32>
    %146 = arith.addf %142, %145 : vector<8x32xf32>
    %147 = arith.negf %146 : vector<8x32xf32>
    %148 = math.exp %147 : vector<8x32xf32>
    %cst_60 = arith.constant 1.000000e+00 : f32
    %149 = vector.broadcast %cst_60 : f32 to vector<8x32xf32>
    %150 = arith.addf %149, %148 : vector<8x32xf32>
    %151 = arith.divf %149, %150 : vector<8x32xf32>
    %152 = arith.mulf %146, %151 : vector<8x32xf32>
    %153 = arith.truncf %152 : vector<8x32xf32> to vector<8x32xbf16>
    %c0_61 = arith.constant 0 : index
    %c0_62 = arith.constant 0 : index
    %c0_63 = arith.constant 0 : index
    %154 = vector.load %arg12[%c0_61, %c0_62, %c0_63] : memref<1x32x32xbf16, #tpu.memory_space<vmem>>, vector<1x32x32xbf16>
    %155 = vector.shape_cast %154 : vector<1x32x32xbf16> to vector<32x32xbf16>
    %cst_64 = arith.constant dense<0.000000e+00> : vector<8x32xf32>
    %156 = tpu.matmul %153, %155, %cst_64 {dimension_numbers = #tpu.dot_dimension_numbers<[1], [0], [0], [1], [0, 0, 1, 1], [], []>} : vector<8x32xbf16>, vector<32x32xbf16>, vector<8x32xf32> -> vector<8x32xf32>
    %c0_65 = arith.constant 0 : index
    %c0_66 = arith.constant 0 : index
    %c0_67 = arith.constant 0 : index
    %157 = vector.load %arg13[%c0_65, %c0_66, %c0_67] : memref<1x1x32xf32, #tpu.memory_space<vmem>>, vector<1x1x32xf32>
    %158 = vector.shape_cast %157 : vector<1x1x32xf32> to vector<1x32xf32>
    %159 = vector.broadcast %158 : vector<1x32xf32> to vector<8x32xf32>
    %160 = arith.addf %156, %159 : vector<8x32xf32>
    %161 = arith.addf %138, %160 : vector<8x32xf32>
    %c0_68 = arith.constant 0 : index
    %c0_69 = arith.constant 0 : index
    %c0_70 = arith.constant 0 : index
    %162 = vector.load %arg14[%c0_68, %c0_69, %c0_70] : memref<1x1x32xf32, #tpu.memory_space<vmem>>, vector<1x1x32xf32>
    %163 = vector.shape_cast %162 : vector<1x1x32xf32> to vector<1x32xf32>
    %c0_71 = arith.constant 0 : index
    %c0_72 = arith.constant 0 : index
    %c0_73 = arith.constant 0 : index
    %164 = vector.load %arg15[%c0_71, %c0_72, %c0_73] : memref<1x1x32xf32, #tpu.memory_space<vmem>>, vector<1x1x32xf32>
    %165 = vector.shape_cast %164 : vector<1x1x32xf32> to vector<1x32xf32>
    %cst_74 = arith.constant dense<0.000000e+00> : vector<8xf32>
    %166 = vector.multi_reduction <add>, %161, %cst_74 [1] : vector<8x32xf32> to vector<8xf32>
    %167 = vector.shape_cast %166 : vector<8xf32> to vector<8x1xf32>
    %cst_75 = arith.constant 3.200000e+01 : f32
    %168 = vector.broadcast %cst_75 : f32 to vector<8x1xf32>
    %169 = arith.divf %167, %168 : vector<8x1xf32>
    %170 = vector.broadcast %169 : vector<8x1xf32> to vector<8x32xf32>
    %171 = arith.subf %161, %170 : vector<8x32xf32>
    %172 = arith.mulf %171, %171 : vector<8x32xf32>
    %cst_76 = arith.constant dense<0.000000e+00> : vector<8xf32>
    %173 = vector.multi_reduction <add>, %172, %cst_76 [1] : vector<8x32xf32> to vector<8xf32>
    %174 = vector.shape_cast %173 : vector<8xf32> to vector<8x1xf32>
    %cst_77 = arith.constant 3.200000e+01 : f32
    %175 = vector.broadcast %cst_77 : f32 to vector<8x1xf32>
    %176 = arith.divf %174, %175 : vector<8x1xf32>
    %177 = vector.broadcast %169 : vector<8x1xf32> to vector<8x32xf32>
    %178 = arith.subf %161, %177 : vector<8x32xf32>
    %cst_78 = arith.constant 9.99999974E-6 : f32
    %179 = vector.broadcast %cst_78 : f32 to vector<8x1xf32>
    %180 = arith.addf %176, %179 : vector<8x1xf32>
    %181 = math.rsqrt %180 : vector<8x1xf32>
    %182 = vector.broadcast %181 : vector<8x1xf32> to vector<8x32xf32>
    %183 = arith.mulf %178, %182 : vector<8x32xf32>
    %184 = vector.broadcast %163 : vector<1x32xf32> to vector<8x32xf32>
    %185 = arith.mulf %183, %184 : vector<8x32xf32>
    %186 = vector.broadcast %165 : vector<1x32xf32> to vector<8x32xf32>
    %187 = arith.addf %185, %186 : vector<8x32xf32>
    %c0_79 = arith.constant 0 : index
    %c0_80 = arith.constant 0 : index
    %188 = vector.load %arg19[%c0_79, %c0_80] : memref<8x32xf32, #tpu.memory_space<vmem>>, vector<8x32xf32>
    tpu.vector_store %arg19[%c0_79, %c0_80], %187 {strides = array<i32>} : memref<8x32xf32, #tpu.memory_space<vmem>>, vector<8x32xf32>,
    %c1_i32 = arith.constant 1 : i32
    %189 = arith.cmpi eq, %arg1, %c1_i32 : i32
    %190 = arith.extui %189 : i1 to i32
    %c0_i32_81 = arith.constant 0 : i32
    %191 = arith.cmpi ne, %190, %c0_i32_81 : i32
    scf.if %191 {
      %192 = arith.truncf %187 : vector<8x32xf32> to vector<8x32xbf16>
      %c0_82 = arith.constant 0 : index
      %c0_83 = arith.constant 0 : index
      %193 = vector.load %arg16[%c0_82, %c0_83] : memref<32x128xbf16, #tpu.memory_space<vmem>>, vector<32x128xbf16>
      %cst_84 = arith.constant dense<0.000000e+00> : vector<8x128xf32>
      %194 = tpu.matmul %192, %193, %cst_84 {dimension_numbers = #tpu.dot_dimension_numbers<[1], [0], [0], [1], [0, 0, 1, 1], [], []>} : vector<8x32xbf16>, vector<32x128xbf16>, vector<8x128xf32> -> vector<8x128xf32>
      %c0_85 = arith.constant 0 : index
      %c0_86 = arith.constant 0 : index
      %195 = vector.load %arg17[%c0_85, %c0_86] : memref<1x128xf32, #tpu.memory_space<vmem>>, vector<1x128xf32>
      %196 = vector.broadcast %195 : vector<1x128xf32> to vector<8x128xf32>
      %197 = arith.addf %194, %196 : vector<8x128xf32>
      %c0_87 = arith.constant 0 : index
      %c0_88 = arith.constant 0 : index
      %198 = vector.load %arg18[%c0_87, %c0_88] : memref<8x128xf32, #tpu.memory_space<vmem>>, vector<8x128xf32>
      tpu.vector_store %arg18[%c0_87, %c0_88], %197 {strides = array<i32>} : memref<8x128xf32, #tpu.memory_space<vmem>>, vector<8x128xf32>,
    } else {
    }
    return
  }
  func.func @transform_0(%arg0: i32, %arg1: i32) -> (i32, i32, i32) {
    %c0_i32 = arith.constant 0 : i32
    %c0_i32_0 = arith.constant 0 : i32
    %c0_i32_1 = arith.constant 0 : i32
    return %arg0, %c0_i32, %c0_i32_0 : i32, i32, i32
  }
  func.func @transform_1(%arg0: i32, %arg1: i32) -> (i32, i32) {
    %c0_i32 = arith.constant 0 : i32
    %c0_i32_0 = arith.constant 0 : i32
    return %arg0, %c0_i32 : i32, i32
  }
  func.func @transform_2(%arg0: i32, %arg1: i32) -> (i32, i32, i32) {
    %c0_i32 = arith.constant 0 : i32
    %c0_i32_0 = arith.constant 0 : i32
    %c0_i32_1 = arith.constant 0 : i32
    return %arg1, %c0_i32, %c0_i32_0 : i32, i32, i32
  }
  func.func @transform_3(%arg0: i32, %arg1: i32) -> (i32, i32, i32) {
    %c0_i32 = arith.constant 0 : i32
    %c0_i32_0 = arith.constant 0 : i32
    %c0_i32_1 = arith.constant 0 : i32
    return %arg1, %c0_i32, %c0_i32_0 : i32, i32, i32
  }
  func.func @transform_4(%arg0: i32, %arg1: i32) -> (i32, i32, i32) {
    %c0_i32 = arith.constant 0 : i32
    %c0_i32_0 = arith.constant 0 : i32
    %c0_i32_1 = arith.constant 0 : i32
    return %arg1, %c0_i32, %c0_i32_0 : i32, i32, i32
  }
  func.func @transform_5(%arg0: i32, %arg1: i32) -> (i32, i32, i32) {
    %c0_i32 = arith.constant 0 : i32
    %c0_i32_0 = arith.constant 0 : i32
    %c0_i32_1 = arith.constant 0 : i32
    return %arg1, %c0_i32, %c0_i32_0 : i32, i32, i32
  }
  func.func @transform_6(%arg0: i32, %arg1: i32) -> (i32, i32, i32) {
    %c0_i32 = arith.constant 0 : i32
    %c0_i32_0 = arith.constant 0 : i32
    %c0_i32_1 = arith.constant 0 : i32
    return %arg1, %c0_i32, %c0_i32_0 : i32, i32, i32
  }
  func.func @transform_7(%arg0: i32, %arg1: i32) -> (i32, i32, i32) {
    %c0_i32 = arith.constant 0 : i32
    %c0_i32_0 = arith.constant 0 : i32
    %c0_i32_1 = arith.constant 0 : i32
    return %arg1, %c0_i32, %c0_i32_0 : i32, i32, i32
  }
  func.func @transform_8(%arg0: i32, %arg1: i32) -> (i32, i32, i32) {
    %c0_i32 = arith.constant 0 : i32
    %c0_i32_0 = arith.constant 0 : i32
    %c0_i32_1 = arith.constant 0 : i32
    return %arg1, %c0_i32, %c0_i32_0 : i32, i32, i32
  }
  func.func @transform_9(%arg0: i32, %arg1: i32) -> (i32, i32, i32) {
    %c0_i32 = arith.constant 0 : i32
    %c0_i32_0 = arith.constant 0 : i32
    %c0_i32_1 = arith.constant 0 : i32
    return %arg1, %c0_i32, %c0_i32_0 : i32, i32, i32
  }
  func.func @transform_10(%arg0: i32, %arg1: i32) -> (i32, i32, i32) {
    %c0_i32 = arith.constant 0 : i32
    %c0_i32_0 = arith.constant 0 : i32
    %c0_i32_1 = arith.constant 0 : i32
    return %arg1, %c0_i32, %c0_i32_0 : i32, i32, i32
  }
  func.func @transform_11(%arg0: i32, %arg1: i32) -> (i32, i32, i32) {
    %c0_i32 = arith.constant 0 : i32
    %c0_i32_0 = arith.constant 0 : i32
    %c0_i32_1 = arith.constant 0 : i32
    return %arg1, %c0_i32, %c0_i32_0 : i32, i32, i32
  }
  func.func @transform_12(%arg0: i32, %arg1: i32) -> (i32, i32, i32) {
    %c0_i32 = arith.constant 0 : i32
    %c0_i32_0 = arith.constant 0 : i32
    %c0_i32_1 = arith.constant 0 : i32
    return %arg1, %c0_i32, %c0_i32_0 : i32, i32, i32
  }
  func.func @transform_13(%arg0: i32, %arg1: i32) -> (i32, i32, i32) {
    %c0_i32 = arith.constant 0 : i32
    %c0_i32_0 = arith.constant 0 : i32
    %c0_i32_1 = arith.constant 0 : i32
    return %arg1, %c0_i32, %c0_i32_0 : i32, i32, i32
  }
  func.func @transform_14(%arg0: i32, %arg1: i32) -> (i32, i32) {
    %c0_i32 = arith.constant 0 : i32
    %c0_i32_0 = arith.constant 0 : i32
    %c0_i32_1 = arith.constant 0 : i32
    return %c0_i32, %c0_i32_0 : i32, i32
  }
  func.func @transform_15(%arg0: i32, %arg1: i32) -> (i32, i32) {
    %c0_i32 = arith.constant 0 : i32
    %c0_i32_0 = arith.constant 0 : i32
    %c0_i32_1 = arith.constant 0 : i32
    return %c0_i32, %c0_i32_0 : i32, i32
  }
  func.func @transform_16(%arg0: i32, %arg1: i32) -> (i32, i32) {
    %c0_i32 = arith.constant 0 : i32
    %c0_i32_0 = arith.constant 0 : i32
    return %arg0, %c0_i32 : i32, i32
  }
}

</mosaic_0001>

<llo_original>
// kernel: transformer_model_forward.1
$region0: #{transformer_model_forward.1}
  #allocation0 [shape = 'u32[]', space=smem, size = 0x4, offset = 0x4, fixed_abs, tag = 'smem constant byte address 0x4 - core index']
  #allocation1 [shape = 'u32[72,128]{1,0:T(1,128)}', space=vmem, size = 0x9000, scoped, tag = 'internal scratch']
  #allocation2 [shape = 'f32[8,32]{1,0:T(8,128)}', space=vmem, size = 0x1000, scoped, tag = 'scratch operand']
  #allocation3 [shape = 'f32[1,8,8]{2,1,0:T(8,128)}', space=vmem, size = 0x1000, scoped, tag = 'scratch operand']
  #allocation4 [shape = 'bf16[8,32]{1,0:T(8,128)(2,1)}', space=vmem, size = 0x800, scoped, tag = 'scratch operand']
  %s0 = inlined_call_operand.vmem [shape: f32[2,1,8], index: 0, kind: input, shape index: {}]
  %s1 = inlined_call_operand.vmem [shape: f32[16,32], index: 1, kind: input, shape index: {}]
  %s2 = inlined_call_operand.vmem [shape: bf16[2,32,96], index: 2, kind: input, shape index: {}]
  %s3 = inlined_call_operand.vmem [shape: f32[2,1,96], index: 3, kind: input, shape index: {}]
  %s4 = inlined_call_operand.vmem [shape: bf16[2,32,32], index: 4, kind: input, shape index: {}]
  %s5 = inlined_call_operand.vmem [shape: f32[2,1,32], index: 5, kind: input, shape index: {}]
  %s6 = inlined_call_operand.vmem [shape: f32[2,1,32], index: 6, kind: input, shape index: {}]
  %s7 = inlined_call_operand.vmem [shape: f32[2,1,32], index: 7, kind: input, shape index: {}]
  %s8 = inlined_call_operand.vmem [shape: bf16[2,32,32], index: 8, kind: input, shape index: {}]
  %s9 = inlined_call_operand.vmem [shape: f32[2,1,32], index: 9, kind: input, shape index: {}]
  %s10 = inlined_call_operand.vmem [shape: bf16[2,32,32], index: 10, kind: input, shape index: {}]
  %s11 = inlined_call_operand.vmem [shape: f32[2,1,32], index: 11, kind: input, shape index: {}]
  %s12 = inlined_call_operand.vmem [shape: f32[2,1,32], index: 12, kind: input, shape index: {}]
  %s13 = inlined_call_operand.vmem [shape: f32[2,1,32], index: 13, kind: input, shape index: {}]
  %s14 = inlined_call_operand.vmem [shape: bf16[32,128], index: 14, kind: input, shape index: {}]
  %s15 = inlined_call_operand.vmem [shape: f32[1,128], index: 15, kind: input, shape index: {}]
  %s16 = inlined_call_operand.vmem [shape: f32[16,128], index: 16, kind: output, shape index: {}]
  %s17 = sld [smem:[#allocation0]]
  $region105: #{transformer_model_forward.1} parent=0
    _
  %s19 = ssub.s32 1, %s17
  %s20 = scalar_select 0, %s19, %s17
  loop: start=0, step=1, limit=6
  $region2: #{transformer_model_forward.1} parent=0 // loop_pre_header
    _
  $region3: #{transformer_model_forward.1} parent=0 // loop_header
    %s22 = sphi 0, %s26
    %p23 = scmp.ge.s32.totalorder %s22, 6
    %s29 = sphi 0, %s41
    %s30 = sphi 0, %s37
    %s31 = sphi 0, %s29
    %s32 = sphi 0, %s30
    %s33 = sphi 0, %s31
    %s34 = sphi 0, %s32
    %s44 = sphi 0, %s46
    %s47 = sphi 0, %s44
    %s48 = sphi 0, %s47
    %s64 = sphi 0, %s48
    %s70 = sphi 0, %s72
    %s73 = sphi 0, %s70
    %s74 = sphi 0, %s73
    %s90 = sphi 0, %s74
    %s96 = sphi 0, %s98
    %s99 = sphi 0, %s96
    %s100 = sphi 0, %s99
    %s116 = sphi 0, %s100
    %s122 = sphi 0, %s124
    %s125 = sphi 0, %s122
    %s126 = sphi 0, %s125
    %s142 = sphi 0, %s126
    %s148 = sphi 0, %s150
    %s151 = sphi 0, %s148
    %s152 = sphi 0, %s151
    %s168 = sphi 0, %s152
    %s174 = sphi 0, %s176
    %s177 = sphi 0, %s174
    %s178 = sphi 0, %s177
    %s194 = sphi 0, %s178
    %s200 = sphi 0, %s202
    %s203 = sphi 0, %s200
    %s204 = sphi 0, %s203
    %s220 = sphi 0, %s204
    %s226 = sphi 0, %s228
    %s229 = sphi 0, %s226
    %s230 = sphi 0, %s229
    %s246 = sphi 0, %s230
    %s252 = sphi 0, %s254
    %s255 = sphi 0, %s252
    %s256 = sphi 0, %s255
    %s272 = sphi 0, %s256
    %s278 = sphi 0, %s280
    %s281 = sphi 0, %s278
    %s282 = sphi 0, %s281
    %s298 = sphi 0, %s282
    %s304 = sphi 0, %s306
    %s307 = sphi 0, %s304
    %s308 = sphi 0, %s307
    %s324 = sphi 0, %s308
    %s330 = sphi 0, %s332
    %s333 = sphi 0, %s330
    %s334 = sphi 0, %s333
    %s350 = sphi 0, %s334
    %s356 = sphi 0, %s358
    %s359 = sphi 0, %s356
    %s360 = sphi 0, %s359
    %s376 = sphi 0, %s360
    %s382 = sphi 0, %s384
    %s385 = sphi 0, %s382
    %s386 = sphi 0, %s385
    %s402 = sphi 0, %s386
    %s406 = sphi 0, %s406
    %s408 = sphi 0, %s406
    %s409 = sphi 0, %s408
    %s423 = sphi 0, %s409
    %s427 = sphi 0, %s427
    %s429 = sphi 0, %s427
    %s430 = sphi 0, %s429
    %s444 = sphi 0, %s430
    %s450 = sphi 0, %s452
    %s453 = sphi 0, %s450
    %s454 = sphi 0, %s453
    %s470 = sphi 0, %s454
  $region4: #{transformer_model_forward.1} parent=0 // loop_header_branch
    %25 = sbr.rel (%p23) target = $region8
  $region5: #{transformer_model_forward.1} parent=0 // loop_body
    %s27 = ssub.s32 %s22, 1
    %s28 = ssub.s32 %s22, 2
    %s35 = sadd.s32 1, %s30
    %p36 = scmp.ge.s32.totalorder %s35, 2
    %s37 = scalar_select %p36, 0, %s35
    %s38 = sadd.s32 1, %s29
    %s39 = scalar_select %p36, %s38, %s29
    %p40 = scmp.ge.s32.totalorder %s39, 2
    %s41 = scalar_select %p40, 0, %s39
    %s42 = ssub.s32 %s29, %s41
    %p43 = scmp.eq.s32.totalorder %s42, 0
    %s45 = sadd.s32 %s44, 1
    %s46 = scalar_select %p43, %s44, %s45
    %p49 = pneg %p43
    %p50 = scmp.eq.s32.totalorder %s22, 3
    %p51 = por %p49, %p50
    %p52 = scmp.ne.s32.totalorder %s44, %s47
    %p53 = scmp.eq.s32.totalorder %s22, 0
    %p54 = por %p52, %p53
    %p55 = scmp.ne.s32.totalorder %s44, %s47
    %p56 = scmp.eq.s32.totalorder %s27, 3
    %p57 = por %p55, %p56
    %p58 = scmp.ne.s32.totalorder %s47, %s48
    %p59 = scmp.eq.s32.totalorder %s27, 0
    %p60 = por %p58, %p59
    %p61 = scmp.ne.s32.totalorder %s47, %s48
    %p62 = scmp.eq.s32.totalorder %s28, 3
    %p63 = por %p61, %p62
    %p65 = scmp.ne.s32.totalorder %s48, %s64
    %p66 = scmp.eq.s32.totalorder %s28, 0
    %p67 = por %p65, %p66
    %s68 = ssub.s32 %s29, %s41
    %p69 = scmp.eq.s32.totalorder %s68, 0
    %s71 = sadd.s32 %s70, 1
    %s72 = scalar_select %p69, %s70, %s71
    %p75 = pneg %p69
    %p76 = scmp.eq.s32.totalorder %s22, 3
    %p77 = por %p75, %p76
    %p78 = scmp.ne.s32.totalorder %s70, %s73
    %p79 = scmp.eq.s32.totalorder %s22, 0
    %p80 = por %p78, %p79
    %p81 = scmp.ne.s32.totalorder %s70, %s73
    %p82 = scmp.eq.s32.totalorder %s27, 3
    %p83 = por %p81, %p82
    %p84 = scmp.ne.s32.totalorder %s73, %s74
    %p85 = scmp.eq.s32.totalorder %s27, 0
    %p86 = por %p84, %p85
    %p87 = scmp.ne.s32.totalorder %s73, %s74
    %p88 = scmp.eq.s32.totalorder %s28, 3
    %p89 = por %p87, %p88
    %p91 = scmp.ne.s32.totalorder %s74, %s90
    %p92 = scmp.eq.s32.totalorder %s28, 0
    %p93 = por %p91, %p92
    %s94 = ssub.s32 %s30, %s37
    %p95 = scmp.eq.s32.totalorder %s94, 0
    %s97 = sadd.s32 %s96, 1
    %s98 = scalar_select %p95, %s96, %s97
    %p101 = pneg %p95
    %p102 = scmp.eq.s32.totalorder %s22, 3
    %p103 = por %p101, %p102
    %p104 = scmp.ne.s32.totalorder %s96, %s99
    %p105 = scmp.eq.s32.totalorder %s22, 0
    %p106 = por %p104, %p105
    %p107 = scmp.ne.s32.totalorder %s96, %s99
    %p108 = scmp.eq.s32.totalorder %s27, 3
    %p109 = por %p107, %p108
    %p110 = scmp.ne.s32.totalorder %s99, %s100
    %p111 = scmp.eq.s32.totalorder %s27, 0
    %p112 = por %p110, %p111
    %p113 = scmp.ne.s32.totalorder %s99, %s100
    %p114 = scmp.eq.s32.totalorder %s28, 3
    %p115 = por %p113, %p114
    %p117 = scmp.ne.s32.totalorder %s100, %s116
    %p118 = scmp.eq.s32.totalorder %s28, 0
    %p119 = por %p117, %p118
    %s120 = ssub.s32 %s30, %s37
    %p121 = scmp.eq.s32.totalorder %s120, 0
    %s123 = sadd.s32 %s122, 1
    %s124 = scalar_select %p121, %s122, %s123
    %p127 = pneg %p121
    %p128 = scmp.eq.s32.totalorder %s22, 3
    %p129 = por %p127, %p128
    %p130 = scmp.ne.s32.totalorder %s122, %s125
    %p131 = scmp.eq.s32.totalorder %s22, 0
    %p132 = por %p130, %p131
    %p133 = scmp.ne.s32.totalorder %s122, %s125
    %p134 = scmp.eq.s32.totalorder %s27, 3
    %p135 = por %p133, %p134
    %p136 = scmp.ne.s32.totalorder %s125, %s126
    %p137 = scmp.eq.s32.totalorder %s27, 0
    %p138 = por %p136, %p137
    %p139 = scmp.ne.s32.totalorder %s125, %s126
    %p140 = scmp.eq.s32.totalorder %s28, 3
    %p141 = por %p139, %p140
    %p143 = scmp.ne.s32.totalorder %s126, %s142
    %p144 = scmp.eq.s32.totalorder %s28, 0
    %p145 = por %p143, %p144
    %s146 = ssub.s32 %s30, %s37
    %p147 = scmp.eq.s32.totalorder %s146, 0
    %s149 = sadd.s32 %s148, 1
    %s150 = scalar_select %p147, %s148, %s149
    %p153 = pneg %p147
    %p154 = scmp.eq.s32.totalorder %s22, 3
    %p155 = por %p153, %p154
    %p156 = scmp.ne.s32.totalorder %s148, %s151
    %p157 = scmp.eq.s32.totalorder %s22, 0
    %p158 = por %p156, %p157
    %p159 = scmp.ne.s32.totalorder %s148, %s151
    %p160 = scmp.eq.s32.totalorder %s27, 3
    %p161 = por %p159, %p160
    %p162 = scmp.ne.s32.totalorder %s151, %s152
    %p163 = scmp.eq.s32.totalorder %s27, 0
    %p164 = por %p162, %p163
    %p165 = scmp.ne.s32.totalorder %s151, %s152
    %p166 = scmp.eq.s32.totalorder %s28, 3
    %p167 = por %p165, %p166
    %p169 = scmp.ne.s32.totalorder %s152, %s168
    %p170 = scmp.eq.s32.totalorder %s28, 0
    %p171 = por %p169, %p170
    %s172 = ssub.s32 %s30, %s37
    %p173 = scmp.eq.s32.totalorder %s172, 0
    %s175 = sadd.s32 %s174, 1
    %s176 = scalar_select %p173, %s174, %s175
    %p179 = pneg %p173
    %p180 = scmp.eq.s32.totalorder %s22, 3
    %p181 = por %p179, %p180
    %p182 = scmp.ne.s32.totalorder %s174, %s177
    %p183 = scmp.eq.s32.totalorder %s22, 0
    %p184 = por %p182, %p183
    %p185 = scmp.ne.s32.totalorder %s174, %s177
    %p186 = scmp.eq.s32.totalorder %s27, 3
    %p187 = por %p185, %p186
    %p188 = scmp.ne.s32.totalorder %s177, %s178
    %p189 = scmp.eq.s32.totalorder %s27, 0
    %p190 = por %p188, %p189
    %p191 = scmp.ne.s32.totalorder %s177, %s178
    %p192 = scmp.eq.s32.totalorder %s28, 3
    %p193 = por %p191, %p192
    %p195 = scmp.ne.s32.totalorder %s178, %s194
    %p196 = scmp.eq.s32.totalorder %s28, 0
    %p197 = por %p195, %p196
    %s198 = ssub.s32 %s30, %s37
    %p199 = scmp.eq.s32.totalorder %s198, 0
    %s201 = sadd.s32 %s200, 1
    %s202 = scalar_select %p199, %s200, %s201
    %p205 = pneg %p199
    %p206 = scmp.eq.s32.totalorder %s22, 3
    %p207 = por %p205, %p206
    %p208 = scmp.ne.s32.totalorder %s200, %s203
    %p209 = scmp.eq.s32.totalorder %s22, 0
    %p210 = por %p208, %p209
    %p211 = scmp.ne.s32.totalorder %s200, %s203
    %p212 = scmp.eq.s32.totalorder %s27, 3
    %p213 = por %p211, %p212
    %p214 = scmp.ne.s32.totalorder %s203, %s204
    %p215 = scmp.eq.s32.totalorder %s27, 0
    %p216 = por %p214, %p215
    %p217 = scmp.ne.s32.totalorder %s203, %s204
    %p218 = scmp.eq.s32.totalorder %s28, 3
    %p219 = por %p217, %p218
    %p221 = scmp.ne.s32.totalorder %s204, %s220
    %p222 = scmp.eq.s32.totalorder %s28, 0
    %p223 = por %p221, %p222
    %s224 = ssub.s32 %s30, %s37
    %p225 = scmp.eq.s32.totalorder %s224, 0
    %s227 = sadd.s32 %s226, 1
    %s228 = scalar_select %p225, %s226, %s227
    %p231 = pneg %p225
    %p232 = scmp.eq.s32.totalorder %s22, 3
    %p233 = por %p231, %p232
    %p234 = scmp.ne.s32.totalorder %s226, %s229
    %p235 = scmp.eq.s32.totalorder %s22, 0
    %p236 = por %p234, %p235
    %p237 = scmp.ne.s32.totalorder %s226, %s229
    %p238 = scmp.eq.s32.totalorder %s27, 3
    %p239 = por %p237, %p238
    %p240 = scmp.ne.s32.totalorder %s229, %s230
    %p241 = scmp.eq.s32.totalorder %s27, 0
    %p242 = por %p240, %p241
    %p243 = scmp.ne.s32.totalorder %s229, %s230
    %p244 = scmp.eq.s32.totalorder %s28, 3
    %p245 = por %p243, %p244
    %p247 = scmp.ne.s32.totalorder %s230, %s246
    %p248 = scmp.eq.s32.totalorder %s28, 0
    %p249 = por %p247, %p248
    %s250 = ssub.s32 %s30, %s37
    %p251 = scmp.eq.s32.totalorder %s250, 0
    %s253 = sadd.s32 %s252, 1
    %s254 = scalar_select %p251, %s252, %s253
    %p257 = pneg %p251
    %p258 = scmp.eq.s32.totalorder %s22, 3
    %p259 = por %p257, %p258
    %p260 = scmp.ne.s32.totalorder %s252, %s255
    %p261 = scmp.eq.s32.totalorder %s22, 0
    %p262 = por %p260, %p261
    %p263 = scmp.ne.s32.totalorder %s252, %s255
    %p264 = scmp.eq.s32.totalorder %s27, 3
    %p265 = por %p263, %p264
    %p266 = scmp.ne.s32.totalorder %s255, %s256
    %p267 = scmp.eq.s32.totalorder %s27, 0
    %p268 = por %p266, %p267
    %p269 = scmp.ne.s32.totalorder %s255, %s256
    %p270 = scmp.eq.s32.totalorder %s28, 3
    %p271 = por %p269, %p270
    %p273 = scmp.ne.s32.totalorder %s256, %s272
    %p274 = scmp.eq.s32.totalorder %s28, 0
    %p275 = por %p273, %p274
    %s276 = ssub.s32 %s30, %s37
    %p277 = scmp.eq.s32.totalorder %s276, 0
    %s279 = sadd.s32 %s278, 1
    %s280 = scalar_select %p277, %s278, %s279
    %p283 = pneg %p277
    %p284 = scmp.eq.s32.totalorder %s22, 3
    %p285 = por %p283, %p284
    %p286 = scmp.ne.s32.totalorder %s278, %s281
    %p287 = scmp.eq.s32.totalorder %s22, 0
    %p288 = por %p286, %p287
    %p289 = scmp.ne.s32.totalorder %s278, %s281
    %p290 = scmp.eq.s32.totalorder %s27, 3
    %p291 = por %p289, %p290
    %p292 = scmp.ne.s32.totalorder %s281, %s282
    %p293 = scmp.eq.s32.totalorder %s27, 0
    %p294 = por %p292, %p293
    %p295 = scmp.ne.s32.totalorder %s281, %s282
    %p296 = scmp.eq.s32.totalorder %s28, 3
    %p297 = por %p295, %p296
    %p299 = scmp.ne.s32.totalorder %s282, %s298
    %p300 = scmp.eq.s32.totalorder %s28, 0
    %p301 = por %p299, %p300
    %s302 = ssub.s32 %s30, %s37
    %p303 = scmp.eq.s32.totalorder %s302, 0
    %s305 = sadd.s32 %s304, 1
    %s306 = scalar_select %p303, %s304, %s305
    %p309 = pneg %p303
    %p310 = scmp.eq.s32.totalorder %s22, 3
    %p311 = por %p309, %p310
    %p312 = scmp.ne.s32.totalorder %s304, %s307
    %p313 = scmp.eq.s32.totalorder %s22, 0
    %p314 = por %p312, %p313
    %p315 = scmp.ne.s32.totalorder %s304, %s307
    %p316 = scmp.eq.s32.totalorder %s27, 3
    %p317 = por %p315, %p316
    %p318 = scmp.ne.s32.totalorder %s307, %s308
    %p319 = scmp.eq.s32.totalorder %s27, 0
    %p320 = por %p318, %p319
    %p321 = scmp.ne.s32.totalorder %s307, %s308
    %p322 = scmp.eq.s32.totalorder %s28, 3
    %p323 = por %p321, %p322
    %p325 = scmp.ne.s32.totalorder %s308, %s324
    %p326 = scmp.eq.s32.totalorder %s28, 0
    %p327 = por %p325, %p326
    %s328 = ssub.s32 %s30, %s37
    %p329 = scmp.eq.s32.totalorder %s328, 0
    %s331 = sadd.s32 %s330, 1
    %s332 = scalar_select %p329, %s330, %s331
    %p335 = pneg %p329
    %p336 = scmp.eq.s32.totalorder %s22, 3
    %p337 = por %p335, %p336
    %p338 = scmp.ne.s32.totalorder %s330, %s333
    %p339 = scmp.eq.s32.totalorder %s22, 0
    %p340 = por %p338, %p339
    %p341 = scmp.ne.s32.totalorder %s330, %s333
    %p342 = scmp.eq.s32.totalorder %s27, 3
    %p343 = por %p341, %p342
    %p344 = scmp.ne.s32.totalorder %s333, %s334
    %p345 = scmp.eq.s32.totalorder %s27, 0
    %p346 = por %p344, %p345
    %p347 = scmp.ne.s32.totalorder %s333, %s334
    %p348 = scmp.eq.s32.totalorder %s28, 3
    %p349 = por %p347, %p348
    %p351 = scmp.ne.s32.totalorder %s334, %s350
    %p352 = scmp.eq.s32.totalorder %s28, 0
    %p353 = por %p351, %p352
    %s354 = ssub.s32 %s30, %s37
    %p355 = scmp.eq.s32.totalorder %s354, 0
    %s357 = sadd.s32 %s356, 1
    %s358 = scalar_select %p355, %s356, %s357
    %p361 = pneg %p355
    %p362 = scmp.eq.s32.totalorder %s22, 3
    %p363 = por %p361, %p362
    %p364 = scmp.ne.s32.totalorder %s356, %s359
    %p365 = scmp.eq.s32.totalorder %s22, 0
    %p366 = por %p364, %p365
    %p367 = scmp.ne.s32.totalorder %s356, %s359
    %p368 = scmp.eq.s32.totalorder %s27, 3
    %p369 = por %p367, %p368
    %p370 = scmp.ne.s32.totalorder %s359, %s360
    %p371 = scmp.eq.s32.totalorder %s27, 0
    %p372 = por %p370, %p371
    %p373 = scmp.ne.s32.totalorder %s359, %s360
    %p374 = scmp.eq.s32.totalorder %s28, 3
    %p375 = por %p373, %p374
    %p377 = scmp.ne.s32.totalorder %s360, %s376
    %p378 = scmp.eq.s32.totalorder %s28, 0
    %p379 = por %p377, %p378
    %s380 = ssub.s32 %s30, %s37
    %p381 = scmp.eq.s32.totalorder %s380, 0
    %s383 = sadd.s32 %s382, 1
    %s384 = scalar_select %p381, %s382, %s383
    %p387 = pneg %p381
    %p388 = scmp.eq.s32.totalorder %s22, 3
    %p389 = por %p387, %p388
    %p390 = scmp.ne.s32.totalorder %s382, %s385
    %p391 = scmp.eq.s32.totalorder %s22, 0
    %p392 = por %p390, %p391
    %p393 = scmp.ne.s32.totalorder %s382, %s385
    %p394 = scmp.eq.s32.totalorder %s27, 3
    %p395 = por %p393, %p394
    %p396 = scmp.ne.s32.totalorder %s385, %s386
    %p397 = scmp.eq.s32.totalorder %s27, 0
    %p398 = por %p396, %p397
    %p399 = scmp.ne.s32.totalorder %s385, %s386
    %p400 = scmp.eq.s32.totalorder %s28, 3
    %p401 = por %p399, %p400
    %p403 = scmp.ne.s32.totalorder %s386, %s402
    %p404 = scmp.eq.s32.totalorder %s28, 0
    %p405 = por %p403, %p404
    %s407 = sadd.s32 %s406, 1
    %p410 = scmp.eq.s32.totalorder %s22, 3
    %p411 = scmp.ne.s32.totalorder %s406, %s408
    %p412 = scmp.eq.s32.totalorder %s22, 0
    %p413 = por %p411, %p412
    %p414 = scmp.ne.s32.totalorder %s406, %s408
    %p415 = scmp.eq.s32.totalorder %s27, 3
    %p416 = por %p414, %p415
    %p417 = scmp.ne.s32.totalorder %s408, %s409
    %p418 = scmp.eq.s32.totalorder %s27, 0
    %p419 = por %p417, %p418
    %p420 = scmp.ne.s32.totalorder %s408, %s409
    %p421 = scmp.eq.s32.totalorder %s28, 3
    %p422 = por %p420, %p421
    %p424 = scmp.ne.s32.totalorder %s409, %s423
    %p425 = scmp.eq.s32.totalorder %s28, 0
    %p426 = por %p424, %p425
    %s428 = sadd.s32 %s427, 1
    %p431 = scmp.eq.s32.totalorder %s22, 3
    %p432 = scmp.ne.s32.totalorder %s427, %s429
    %p433 = scmp.eq.s32.totalorder %s22, 0
    %p434 = por %p432, %p433
    %p435 = scmp.ne.s32.totalorder %s427, %s429
    %p436 = scmp.eq.s32.totalorder %s27, 3
    %p437 = por %p435, %p436
    %p438 = scmp.ne.s32.totalorder %s429, %s430
    %p439 = scmp.eq.s32.totalorder %s27, 0
    %p440 = por %p438, %p439
    %p441 = scmp.ne.s32.totalorder %s429, %s430
    %p442 = scmp.eq.s32.totalorder %s28, 3
    %p443 = por %p441, %p442
    %p445 = scmp.ne.s32.totalorder %s430, %s444
    %p446 = scmp.eq.s32.totalorder %s28, 0
    %p447 = por %p445, %p446
    %s448 = ssub.s32 %s29, %s41
    %p449 = scmp.eq.s32.totalorder %s448, 0
    %s451 = sadd.s32 %s450, 1
    %s452 = scalar_select %p449, %s450, %s451
    %p455 = pneg %p449
    %p456 = scmp.eq.s32.totalorder %s22, 3
    %p457 = por %p455, %p456
    %p458 = scmp.ne.s32.totalorder %s450, %s453
    %p459 = scmp.eq.s32.totalorder %s22, 0
    %p460 = por %p458, %p459
    %p461 = scmp.ne.s32.totalorder %s450, %s453
    %p462 = scmp.eq.s32.totalorder %s27, 3
    %p463 = por %p461, %p462
    %p464 = scmp.ne.s32.totalorder %s453, %s454
    %p465 = scmp.eq.s32.totalorder %s27, 0
    %p466 = por %p464, %p465
    %p467 = scmp.ne.s32.totalorder %s453, %s454
    %p468 = scmp.eq.s32.totalorder %s28, 3
    %p469 = por %p467, %p468
    %p471 = scmp.ne.s32.totalorder %s454, %s470
    %p472 = scmp.eq.s32.totalorder %s28, 0
    %p473 = por %p471, %p472
    %p474 = scmp.le.s32.totalorder 1, %s22
    %p475 = scmp.lt.s32.totalorder %s22, 5
    %p476 = pnand %p474, %p475
    %p477 = pneg %p476
    // Predicated region
    $region9: #{transformer_model_forward.1} parent=5 // pred_check
      _
    $region10: #{transformer_model_forward.1} parent=5 // pred_check_branch
      %479 = sbr.rel (%p476) target = $region12
    $region11: #{transformer_model_forward.1} parent=5 // pred_region
      %s480 = ssub.s32 %s22, 1
      // Predicated region
      $region13: #{transformer_model_forward.1} parent=11 // pred_check
        %p481 = pneg %p419
      $region14: #{transformer_model_forward.1} parent=11 // pred_check_branch
        %483 = sbr.rel (%p481) target = $region16
      $region15: #{transformer_model_forward.1} parent=11 // pred_region
        _
      $region16: #{transformer_model_forward.1} parent=11 // pred_fallthru
        _
      // Predicated region
      $region17: #{transformer_model_forward.1} parent=11 // pred_check
        %p484 = pneg %p440
      $region18: #{transformer_model_forward.1} parent=11 // pred_check_branch
        %486 = sbr.rel (%p484) target = $region20
      $region19: #{transformer_model_forward.1} parent=11 // pred_region
        _
      $region20: #{transformer_model_forward.1} parent=11 // pred_fallthru
        _
    $region12: #{transformer_model_forward.1} parent=5 // pred_fallthru
      _
    %p487 = scmp.lt.s32.totalorder %s22, 4
    // Predicated region
    $region21: #{transformer_model_forward.1} parent=5 // pred_check
      %p488 = pneg %p487
    $region22: #{transformer_model_forward.1} parent=5 // pred_check_branch
      %490 = sbr.rel (%p488) target = $region24
    $region23: #{transformer_model_forward.1} parent=5 // pred_region
      // Predicated region
      $region25: #{transformer_model_forward.1} parent=23 // pred_check
        %p491 = pneg %p54
      $region26: #{transformer_model_forward.1} parent=23 // pred_check_branch
        %493 = sbr.rel (%p491) target = $region28
      $region27: #{transformer_model_forward.1} parent=23 // pred_region
        %p494 = scmp.lt.s32.totalorder %s29, 1
        %s495 = scalar_select %p494, %s29, 1
        %s496 = scalar_lea.vmem %s0, %s495
      $region28: #{transformer_model_forward.1} parent=23 // pred_fallthru
        _
      // Predicated region
      $region29: #{transformer_model_forward.1} parent=23 // pred_check
        %p497 = pneg %p80
      $region30: #{transformer_model_forward.1} parent=23 // pred_check_branch
        %499 = sbr.rel (%p497) target = $region32
      $region31: #{transformer_model_forward.1} parent=23 // pred_region
        %p500 = scmp.lt.s32.totalorder %s29, 1
        %s501 = scalar_select %p500, %s29, 1
        %s502 = smul.addr %s501, 8
        %s503 = scalar_lea.vmem %s1, %s502
      $region32: #{transformer_model_forward.1} parent=23 // pred_fallthru
        _
      // Predicated region
      $region33: #{transformer_model_forward.1} parent=23 // pred_check
        %p504 = pneg %p106
      $region34: #{transformer_model_forward.1} parent=23 // pred_check_branch
        %506 = sbr.rel (%p504) target = $region36
      $region35: #{transformer_model_forward.1} parent=23 // pred_region
        %p507 = scmp.lt.s32.totalorder %s30, 1
        %s508 = scalar_select %p507, %s30, 1
        %s509 = smul.addr %s508, 4
        %s510 = smul.addr %s509, 4
        %s511 = scalar_lea.vmem %s2, %s510
      $region36: #{transformer_model_forward.1} parent=23 // pred_fallthru
        _
      // Predicated region
      $region37: #{transformer_model_forward.1} parent=23 // pred_check
        %p512 = pneg %p132
      $region38: #{transformer_model_forward.1} parent=23 // pred_check_branch
        %514 = sbr.rel (%p512) target = $region40
      $region39: #{transformer_model_forward.1} parent=23 // pred_region
        %p515 = scmp.lt.s32.totalorder %s30, 1
        %s516 = scalar_select %p515, %s30, 1
        %s517 = scalar_lea.vmem %s3, %s516
      $region40: #{transformer_model_forward.1} parent=23 // pred_fallthru
        _
      // Predicated region
      $region41: #{transformer_model_forward.1} parent=23 // pred_check
        %p518 = pneg %p158
      $region42: #{transformer_model_forward.1} parent=23 // pred_check_branch
        %520 = sbr.rel (%p518) target = $region44
      $region43: #{transformer_model_forward.1} parent=23 // pred_region
        %p521 = scmp.lt.s32.totalorder %s30, 1
        %s522 = scalar_select %p521, %s30, 1
        %s523 = smul.addr %s522, 4
        %s524 = smul.addr %s523, 4
        %s525 = scalar_lea.vmem %s4, %s524
      $region44: #{transformer_model_forward.1} parent=23 // pred_fallthru
        _
      // Predicated region
      $region45: #{transformer_model_forward.1} parent=23 // pred_check
        %p526 = pneg %p184
      $region46: #{transformer_model_forward.1} parent=23 // pred_check_branch
        %528 = sbr.rel (%p526) target = $region48
      $region47: #{transformer_model_forward.1} parent=23 // pred_region
        %p529 = scmp.lt.s32.totalorder %s30, 1
        %s530 = scalar_select %p529, %s30, 1
        %s531 = scalar_lea.vmem %s5, %s530
      $region48: #{transformer_model_forward.1} parent=23 // pred_fallthru
        _
      // Predicated region
      $region49: #{transformer_model_forward.1} parent=23 // pred_check
        %p532 = pneg %p210
      $region50: #{transformer_model_forward.1} parent=23 // pred_check_branch
        %534 = sbr.rel (%p532) target = $region52
      $region51: #{transformer_model_forward.1} parent=23 // pred_region
        %p535 = scmp.lt.s32.totalorder %s30, 1
        %s536 = scalar_select %p535, %s30, 1
        %s537 = scalar_lea.vmem %s6, %s536
      $region52: #{transformer_model_forward.1} parent=23 // pred_fallthru
        _
      // Predicated region
      $region53: #{transformer_model_forward.1} parent=23 // pred_check
        %p538 = pneg %p236
      $region54: #{transformer_model_forward.1} parent=23 // pred_check_branch
        %540 = sbr.rel (%p538) target = $region56
      $region55: #{transformer_model_forward.1} parent=23 // pred_region
        %p541 = scmp.lt.s32.totalorder %s30, 1
        %s542 = scalar_select %p541, %s30, 1
        %s543 = scalar_lea.vmem %s7, %s542
      $region56: #{transformer_model_forward.1} parent=23 // pred_fallthru
        _
      // Predicated region
      $region57: #{transformer_model_forward.1} parent=23 // pred_check
        %p544 = pneg %p262
      $region58: #{transformer_model_forward.1} parent=23 // pred_check_branch
        %546 = sbr.rel (%p544) target = $region60
      $region59: #{transformer_model_forward.1} parent=23 // pred_region
        %p547 = scmp.lt.s32.totalorder %s30, 1
        %s548 = scalar_select %p547, %s30, 1
        %s549 = smul.addr %s548, 4
        %s550 = smul.addr %s549, 4
        %s551 = scalar_lea.vmem %s8, %s550
      $region60: #{transformer_model_forward.1} parent=23 // pred_fallthru
        _
      // Predicated region
      $region61: #{transformer_model_forward.1} parent=23 // pred_check
        %p552 = pneg %p288
      $region62: #{transformer_model_forward.1} parent=23 // pred_check_branch
        %554 = sbr.rel (%p552) target = $region64
      $region63: #{transformer_model_forward.1} parent=23 // pred_region
        %p555 = scmp.lt.s32.totalorder %s30, 1
        %s556 = scalar_select %p555, %s30, 1
        %s557 = scalar_lea.vmem %s9, %s556
      $region64: #{transformer_model_forward.1} parent=23 // pred_fallthru
        _
      // Predicated region
      $region65: #{transformer_model_forward.1} parent=23 // pred_check
        %p558 = pneg %p314
      $region66: #{transformer_model_forward.1} parent=23 // pred_check_branch
        %560 = sbr.rel (%p558) target = $region68
      $region67: #{transformer_model_forward.1} parent=23 // pred_region
        %p561 = scmp.lt.s32.totalorder %s30, 1
        %s562 = scalar_select %p561, %s30, 1
        %s563 = smul.addr %s562, 4
        %s564 = smul.addr %s563, 4
        %s565 = scalar_lea.vmem %s10, %s564
      $region68: #{transformer_model_forward.1} parent=23 // pred_fallthru
        _
      // Predicated region
      $region69: #{transformer_model_forward.1} parent=23 // pred_check
        %p566 = pneg %p340
      $region70: #{transformer_model_forward.1} parent=23 // pred_check_branch
        %568 = sbr.rel (%p566) target = $region72
      $region71: #{transformer_model_forward.1} parent=23 // pred_region
        %p569 = scmp.lt.s32.totalorder %s30, 1
        %s570 = scalar_select %p569, %s30, 1
        %s571 = scalar_lea.vmem %s11, %s570
      $region72: #{transformer_model_forward.1} parent=23 // pred_fallthru
        _
      // Predicated region
      $region73: #{transformer_model_forward.1} parent=23 // pred_check
        %p572 = pneg %p366
      $region74: #{transformer_model_forward.1} parent=23 // pred_check_branch
        %574 = sbr.rel (%p572) target = $region76
      $region75: #{transformer_model_forward.1} parent=23 // pred_region
        %p575 = scmp.lt.s32.totalorder %s30, 1
        %s576 = scalar_select %p575, %s30, 1
        %s577 = scalar_lea.vmem %s12, %s576
      $region76: #{transformer_model_forward.1} parent=23 // pred_fallthru
        _
      // Predicated region
      $region77: #{transformer_model_forward.1} parent=23 // pred_check
        %p578 = pneg %p392
      $region78: #{transformer_model_forward.1} parent=23 // pred_check_branch
        %580 = sbr.rel (%p578) target = $region80
      $region79: #{transformer_model_forward.1} parent=23 // pred_region
        %p581 = scmp.lt.s32.totalorder %s30, 1
        %s582 = scalar_select %p581, %s30, 1
        %s583 = scalar_lea.vmem %s13, %s582
      $region80: #{transformer_model_forward.1} parent=23 // pred_fallthru
        _
    $region24: #{transformer_model_forward.1} parent=5 // pred_fallthru
      _
    %p584 = scmp.le.s32.totalorder 1, %s22
    %p585 = scmp.lt.s32.totalorder %s22, 5
    %p586 = pnand %p584, %p585
    %p587 = pneg %p586
    // Predicated region
    $region81: #{transformer_model_forward.1} parent=5 // pred_check
      _
    $region82: #{transformer_model_forward.1} parent=5 // pred_check_branch
      %589 = sbr.rel (%p586) target = $region84
    $region83: #{transformer_model_forward.1} parent=5 // pred_region
      %s590 = ssub.s32 %s22, 1
      %p591 = scmp.lt.s32.totalorder %s31, 1
      %s592 = scalar_select %p591, %s31, 1
      %s593 = scalar_lea.vmem %s0, %s592
      %p594 = pneg %p60
      %p595 = pneg %p57
      %p596 = scmp.lt.s32.totalorder %s31, 1
      %s597 = scalar_select %p596, %s31, 1
      %s598 = smul.addr %s597, 8
      %s599 = scalar_lea.vmem %s1, %s598
      %p600 = pneg %p86
      %p601 = pneg %p83
      %p602 = scmp.lt.s32.totalorder %s32, 1
      %s603 = scalar_select %p602, %s32, 1
      %s604 = smul.addr %s603, 4
      %s605 = smul.addr %s604, 4
      %s606 = scalar_lea.vmem %s2, %s605
      %p607 = pneg %p112
      %p608 = pneg %p109
      %p609 = scmp.lt.s32.totalorder %s32, 1
      %s610 = scalar_select %p609, %s32, 1
      %s611 = scalar_lea.vmem %s3, %s610
      %p612 = pneg %p138
      %p613 = pneg %p135
      %p614 = scmp.lt.s32.totalorder %s32, 1
      %s615 = scalar_select %p614, %s32, 1
      %s616 = smul.addr %s615, 4
      %s617 = smul.addr %s616, 4
      %s618 = scalar_lea.vmem %s4, %s617
      %p619 = pneg %p164
      %p620 = pneg %p161
      %p621 = scmp.lt.s32.totalorder %s32, 1
      %s622 = scalar_select %p621, %s32, 1
      %s623 = scalar_lea.vmem %s5, %s622
      %p624 = pneg %p190
      %p625 = pneg %p187
      %p626 = scmp.lt.s32.totalorder %s32, 1
      %s627 = scalar_select %p626, %s32, 1
      %s628 = scalar_lea.vmem %s6, %s627
      %p629 = pneg %p216
      %p630 = pneg %p213
      %p631 = scmp.lt.s32.totalorder %s32, 1
      %s632 = scalar_select %p631, %s32, 1
      %s633 = scalar_lea.vmem %s7, %s632
      %p634 = pneg %p242
      %p635 = pneg %p239
      %p636 = scmp.lt.s32.totalorder %s32, 1
      %s637 = scalar_select %p636, %s32, 1
      %s638 = smul.addr %s637, 4
      %s639 = smul.addr %s638, 4
      %s640 = scalar_lea.vmem %s8, %s639
      %p641 = pneg %p268
      %p642 = pneg %p265
      %p643 = scmp.lt.s32.totalorder %s32, 1
      %s644 = scalar_select %p643, %s32, 1
      %s645 = scalar_lea.vmem %s9, %s644
      %p646 = pneg %p294
      %p647 = pneg %p291
      %p648 = scmp.lt.s32.totalorder %s32, 1
      %s649 = scalar_select %p648, %s32, 1
      %s650 = smul.addr %s649, 4
      %s651 = smul.addr %s650, 4
      %s652 = scalar_lea.vmem %s10, %s651
      %p653 = pneg %p320
      %p654 = pneg %p317
      %p655 = scmp.lt.s32.totalorder %s32, 1
      %s656 = scalar_select %p655, %s32, 1
      %s657 = scalar_lea.vmem %s11, %s656
      %p658 = pneg %p346
      %p659 = pneg %p343
      %p660 = scmp.lt.s32.totalorder %s32, 1
      %s661 = scalar_select %p660, %s32, 1
      %s662 = scalar_lea.vmem %s12, %s661
      %p663 = pneg %p372
      %p664 = pneg %p369
      %p665 = scmp.lt.s32.totalorder %s32, 1
      %s666 = scalar_select %p665, %s32, 1
      %s667 = scalar_lea.vmem %s13, %s666
      %p668 = pneg %p398
      %p669 = pneg %p395
      %p670 = pneg %p419
      %p671 = pneg %p416
      %p672 = pneg %p440
      %p673 = pneg %p437
      %p674 = pneg %p466
      %p675 = pneg %p463
      %p676 = scmp.lt.s32.totalorder %s31, 1
      %s677 = scalar_select %p676, %s31, 1
      %s678 = smul.addr %s677, 8
      %s679 = scalar_lea.vmem %s16, %s678
      %p680 = scmp.lt.s32.totalorder %s31, 1
      %s681 = scalar_select %p680, %s31, 1
      %s682 = scalar_lea.vmem %s0, %s681
      %p683 = scmp.lt.s32.totalorder %s31, 1
      %s684 = scalar_select %p683, %s31, 1
      %s685 = smul.addr %s684, 8
      %s686 = scalar_lea.vmem %s1, %s685
      %p687 = scmp.lt.s32.totalorder %s32, 1
      %s688 = scalar_select %p687, %s32, 1
      %s689 = smul.addr %s688, 4
      %s690 = smul.addr %s689, 4
      %s691 = scalar_lea.vmem %s2, %s690
      %p692 = scmp.lt.s32.totalorder %s32, 1
      %s693 = scalar_select %p692, %s32, 1
      %s694 = scalar_lea.vmem %s3, %s693
      %p695 = scmp.lt.s32.totalorder %s32, 1
      %s696 = scalar_select %p695, %s32, 1
      %s697 = smul.addr %s696, 4
      %s698 = smul.addr %s697, 4
      %s699 = scalar_lea.vmem %s4, %s698
      %p700 = scmp.lt.s32.totalorder %s32, 1
      %s701 = scalar_select %p700, %s32, 1
      %s702 = scalar_lea.vmem %s5, %s701
      %p703 = scmp.lt.s32.totalorder %s32, 1
      %s704 = scalar_select %p703, %s32, 1
      %s705 = scalar_lea.vmem %s6, %s704
      %p706 = scmp.lt.s32.totalorder %s32, 1
      %s707 = scalar_select %p706, %s32, 1
      %s708 = scalar_lea.vmem %s7, %s707
      %p709 = scmp.lt.s32.totalorder %s32, 1
      %s710 = scalar_select %p709, %s32, 1
      %s711 = smul.addr %s710, 4
      %s712 = smul.addr %s711, 4
      %s713 = scalar_lea.vmem %s8, %s712
      %p714 = scmp.lt.s32.totalorder %s32, 1
      %s715 = scalar_select %p714, %s32, 1
      %s716 = scalar_lea.vmem %s9, %s715
      %p717 = scmp.lt.s32.totalorder %s32, 1
      %s718 = scalar_select %p717, %s32, 1
      %s719 = smul.addr %s718, 4
      %s720 = smul.addr %s719, 4
      %s721 = scalar_lea.vmem %s10, %s720
      %p722 = scmp.lt.s32.totalorder %s32, 1
      %s723 = scalar_select %p722, %s32, 1
      %s724 = scalar_lea.vmem %s11, %s723
      %p725 = scmp.lt.s32.totalorder %s32, 1
      %s726 = scalar_select %p725, %s32, 1
      %s727 = scalar_lea.vmem %s12, %s726
      %p728 = scmp.lt.s32.totalorder %s32, 1
      %s729 = scalar_select %p728, %s32, 1
      %s730 = scalar_lea.vmem %s13, %s729
      %p731 = scmp.lt.s32.totalorder %s31, 1
      %s732 = scalar_select %p731, %s31, 1
      %s733 = smul.addr %s732, 8
      %s734 = scalar_lea.vmem %s16, %s733
      %p736 = scmp.eq.s32.totalorder %s32, 0
      // Predicated region
      $region85: #{transformer_model_forward.1} parent=83 // pred_check
        %p737 = pneg %p736
      $region86: #{transformer_model_forward.1} parent=83 // pred_check_branch
        %739 = sbr.rel (%p737) target = $region88
      $region87: #{transformer_model_forward.1} parent=83 // pred_region
        %v740 = vld [vmem:[%s686] sm:$0xff]
        %vm741 = vcmask 261120
        %742 = vst.msk [vmem:[#allocation2] sm:$0xff] %vm741, %v740
        %v743 = vlaneseq
        %v744 = vshrl.u32 %v743, 7
        %v745 = vlaneseq
        %v746 = vand.u32 %v745, 127
        %vm747 = vcmp.ge.s32.totalorder %v744, %v746
        %v748 = vsel %vm747, 0.0, -1e+30
        %v749 = vld [vmem:[%s682] sm:$0x1]
        %v751 = vperm.slane %v749, 0
        %v753 = vadd.f32 %v748, %v751
        %vm754 = vcmask 64512
        %755 = vst.msk [vmem:[#allocation3] sm:$0xff] %vm754, %v753
      $region88: #{transformer_model_forward.1} parent=83 // pred_fallthru
        _
      %v756 = vld [vmem:[#allocation2] sm:$0xff]
      %v757 = vld [vmem:[#allocation3] sm:$0xff]
      %v758 = vpack.c.bf16 %v756, %v756
      %v759 = vld [vmem:[%s691] sm:$0xf]
      %v760 = vld [vmem:[%s691 + $0x4] sm:$0xf]
      %v761 = vld [vmem:[%s691 + $0x8] sm:$0xf]
      %v762 = vld [vmem:[%s691 + $0xc] sm:$0xf]
      %v763 = vld [vmem:[%s694] sm:$0x1]
      %v765 = vperm.slane %v763, 0
      %v771 = vunpack.c.l.b16 %v759
      %v772 = vunpack.c.l.b16 %v760
      %v773 = vunpack.c.l.b16 %v761
      %v774 = vunpack.c.l.b16 %v762
      %v775 = vpack.c.b16 %v772, %v771
      %v776 = vpack.c.b16 %v774, %v773
      %vm779 = vcmask 261120
      %v781 = vsel %vm779, %v758, 0
      %783 = vmatpush.bf16.msra.mxu0 0
      %784 = vmatpush.bf16.msra.mxu0 0
      %785 = vmatpush.bf16.msra.mxu0 0
      %786 = vmatpush.bf16.msra.mxu0 0
      %787 = vmatpush.bf16.msra.mxu0 0
      %788 = vmatpush.bf16.msra.mxu0 0
      %789 = vmatpush.bf16.msra.mxu0 %v776
      %790 = vmatpush.bf16.msra.mxu0 %v775
      %791 = vmatmul.bf16.gmra.mxu0 %v781
      %v792 = vpop.f32.mrf.mxu0
      %v793 = vadd.f32 %v765, %v792
      %v794 = vpop.f32.mrf.mxu0
      %795 = vdwg.mxu0
      %v796 = vmul.f32 %v793, 0.35355338
      %v797 = vpack.c.bf16 %v796, %v796
      %v798 = vpack.c.bf16 %v793, %v793
      %v800 = vunpack.c.l.b16 %v798
      %v801 = vpack.c.b16 %v800, %v800
      %802 = vrot.lane.b32.xlu0 %v801, 96
      %v803 = vpop.permute.xlu0 %802
      %vm804 = vcmask 64512
      %v806 = vsel %vm804, %v797, 0
      %v809 = vsel %vm804, %v803, 0
      %811 = vmatpush.bf16.xpose.msra.mxu0 0
      %812 = vmatpush.bf16.xpose.msra.mxu0 0
      %813 = vmatpush.bf16.xpose.msra.mxu0 0
      %814 = vmatpush.bf16.xpose.msra.mxu0 0
      %815 = vmatpush.bf16.xpose.msra.mxu0 0
      %816 = vmatpush.bf16.xpose.msra.mxu0 0
      %817 = vmatpush.bf16.xpose.msra.mxu0 0
      %818 = vmatpush.bf16.xpose.msra.mxu0 %v809
      %819 = vmatmul.bf16.gmra.mxu0 %v806
      %v820 = vpop.f32.mrf.mxu0
      %v821 = vadd.f32 %v757, %v820
      %v822 = vpop.f32.mrf.mxu0
      %823 = vdwg.mxu0
      %v824 = vsel %vm804, %v821, -inf
      %825 = vmax.xlane.f32.xlu0 %v824
      %v826 = vpop.xlane.xlu0 %825
      %v827 = vsub.f32 %v821, %v826
      %v828 = vmul.f32 %v827, 1.442695
      %v829 = vpow.pop %v828
      %v830 = vsel %vm804, %v829, 0.0
      %831 = vadd.xlane.f32.xlu0 %v830
      %v832 = vpop.xlane.xlu0 %831
      %v833 = vrcp.pop %v832
      %v834 = vmul.f32 %v829, %v833
      %v835 = vpack.c.bf16 %v834, %v834
      %836 = vrot.lane.b32.xlu0 %v801, 64
      %v837 = vpop.permute.xlu0 %836
      %v839 = vsel %vm804, %v835, 0
      %vm841 = vcmask 1043456
      %v843 = vsel %vm841, %v837, 0
      %845 = vmatpush.bf16.msra.mxu0 0
      %846 = vmatpush.bf16.msra.mxu0 0
      %847 = vmatpush.bf16.msra.mxu0 0
      %848 = vmatpush.bf16.msra.mxu0 0
      %849 = vmatpush.bf16.msra.mxu0 0
      %850 = vmatpush.bf16.msra.mxu0 0
      %851 = vmatpush.bf16.msra.mxu0 0
      %852 = vmatpush.bf16.msra.mxu0 %v843
      %853 = vmatmul.bf16.gmra.mxu0 %v839
      %v854 = vpop.f32.mrf.mxu0
      %v855 = vadd.f32 0.0, %v854
      %v856 = vpop.f32.mrf.mxu0
      %857 = vdwg.mxu0
      %v858 = vpack.c.bf16 %v855, %v855
      %vm859 = vcmask 60416
      %860 = vst.msk [vmem:[#allocation4] sm:$0xf] %vm859, %v858
      %v862 = vunpack.c.l.b16 %v797
      %v863 = vpack.c.b16 %v862, %v862
      %864 = vrot.lane.b32.xlu0 %v863, 120
      %v865 = vpop.permute.xlu0 %864
      %866 = vrot.lane.b32.xlu0 %v801, 88
      %v867 = vpop.permute.xlu0 %866
      %v869 = vsel %vm804, %v865, 0
      %v872 = vsel %vm804, %v867, 0
      %874 = vmatpush.bf16.xpose.msra.mxu0 0
      %875 = vmatpush.bf16.xpose.msra.mxu0 0
      %876 = vmatpush.bf16.xpose.msra.mxu0 0
      %877 = vmatpush.bf16.xpose.msra.mxu0 0
      %878 = vmatpush.bf16.xpose.msra.mxu0 0
      %879 = vmatpush.bf16.xpose.msra.mxu0 0
      %880 = vmatpush.bf16.xpose.msra.mxu0 0
      %881 = vmatpush.bf16.xpose.msra.mxu0 %v872
      %882 = vmatmul.bf16.gmra.mxu0 %v869
      %v883 = vpop.f32.mrf.mxu0
      %v884 = vadd.f32 %v757, %v883
      %v885 = vpop.f32.mrf.mxu0
      %886 = vdwg.mxu0
      %v887 = vsel %vm804, %v884, -inf
      %888 = vmax.xlane.f32.xlu0 %v887
      %v889 = vpop.xlane.xlu0 %888
      %v890 = vsub.f32 %v884, %v889
      %v891 = vmul.f32 %v890, 1.442695
      %v892 = vpow.pop %v891
      %v893 = vsel %vm804, %v892, 0.0
      %894 = vadd.xlane.f32.xlu0 %v893
      %v895 = vpop.xlane.xlu0 %894
      %v896 = vrcp.pop %v895
      %v897 = vmul.f32 %v892, %v896
      %v898 = vpack.c.bf16 %v897, %v897
      %899 = vrot.lane.b32.xlu0 %v801, 56
      %v900 = vpop.permute.xlu0 %899
      %v902 = vsel %vm804, %v898, 0
      %v905 = vsel %vm841, %v900, 0
      %907 = vmatpush.bf16.msra.mxu0 0
      %908 = vmatpush.bf16.msra.mxu0 0
      %909 = vmatpush.bf16.msra.mxu0 0
      %910 = vmatpush.bf16.msra.mxu0 0
      %911 = vmatpush.bf16.msra.mxu0 0
      %912 = vmatpush.bf16.msra.mxu0 0
      %913 = vmatpush.bf16.msra.mxu0 0
      %914 = vmatpush.bf16.msra.mxu0 %v905
      %915 = vmatmul.bf16.gmra.mxu0 %v902
      %v916 = vpop.f32.mrf.mxu0
      %v917 = vadd.f32 0.0, %v916
      %v918 = vpop.f32.mrf.mxu0
      %919 = vdwg.mxu0
      %v920 = vpack.c.bf16 %v917, %v917
      %922 = vrot.lane.b32.xlu0 %v920, 8
      %v923 = vpop.permute.xlu0 %922
      %vm925 = vcmask 126016
      %926 = vst.msk [vmem:[#allocation4] sm:$0xf] %vm925, %v923
      %927 = vrot.lane.b32.xlu0 %v863, 112
      %v928 = vpop.permute.xlu0 %927
      %929 = vrot.lane.b32.xlu0 %v801, 80
      %v930 = vpop.permute.xlu0 %929
      %v932 = vsel %vm804, %v928, 0
      %v935 = vsel %vm804, %v930, 0
      %937 = vmatpush.bf16.xpose.msra.mxu0 0
      %938 = vmatpush.bf16.xpose.msra.mxu0 0
      %939 = vmatpush.bf16.xpose.msra.mxu0 0
      %940 = vmatpush.bf16.xpose.msra.mxu0 0
      %941 = vmatpush.bf16.xpose.msra.mxu0 0
      %942 = vmatpush.bf16.xpose.msra.mxu0 0
      %943 = vmatpush.bf16.xpose.msra.mxu0 0
      %944 = vmatpush.bf16.xpose.msra.mxu0 %v935
      %945 = vmatmul.bf16.gmra.mxu0 %v932
      %v946 = vpop.f32.mrf.mxu0
      %v947 = vadd.f32 %v757, %v946
      %v948 = vpop.f32.mrf.mxu0
      %949 = vdwg.mxu0
      %v950 = vsel %vm804, %v947, -inf
      %951 = vmax.xlane.f32.xlu0 %v950
      %v952 = vpop.xlane.xlu0 %951
      %v953 = vsub.f32 %v947, %v952
      %v954 = vmul.f32 %v953, 1.442695
      %v955 = vpow.pop %v954
      %v956 = vsel %vm804, %v955, 0.0
      %957 = vadd.xlane.f32.xlu0 %v956
      %v958 = vpop.xlane.xlu0 %957
      %v959 = vrcp.pop %v958
      %v960 = vmul.f32 %v955, %v959
      %v961 = vpack.c.bf16 %v960, %v960
      %962 = vrot.lane.b32.xlu0 %v801, 48
      %v963 = vpop.permute.xlu0 %962
      %v965 = vsel %vm804, %v961, 0
      %v968 = vsel %vm841, %v963, 0
      %970 = vmatpush.bf16.msra.mxu0 0
      %971 = vmatpush.bf16.msra.mxu0 0
      %972 = vmatpush.bf16.msra.mxu0 0
      %973 = vmatpush.bf16.msra.mxu0 0
      %974 = vmatpush.bf16.msra.mxu0 0
      %975 = vmatpush.bf16.msra.mxu0 0
      %976 = vmatpush.bf16.msra.mxu0 0
      %977 = vmatpush.bf16.msra.mxu0 %v968
      %978 = vmatmul.bf16.gmra.mxu0 %v965
      %v979 = vpop.f32.mrf.mxu0
      %v980 = vadd.f32 0.0, %v979
      %v981 = vpop.f32.mrf.mxu0
      %982 = vdwg.mxu0
      %v983 = vpack.c.bf16 %v980, %v980
      %985 = vrot.lane.b32.xlu0 %v983, 16
      %v986 = vpop.permute.xlu0 %985
      %vm988 = vcmask 191616
      %989 = vst.msk [vmem:[#allocation4] sm:$0xf] %vm988, %v986
      %990 = vrot.lane.b32.xlu0 %v863, 104
      %v991 = vpop.permute.xlu0 %990
      %992 = vrot.lane.b32.xlu0 %v801, 72
      %v993 = vpop.permute.xlu0 %992
      %v995 = vsel %vm804, %v991, 0
      %v998 = vsel %vm804, %v993, 0
      %1000 = vmatpush.bf16.xpose.msra.mxu0 0
      %1001 = vmatpush.bf16.xpose.msra.mxu0 0
      %1002 = vmatpush.bf16.xpose.msra.mxu0 0
      %1003 = vmatpush.bf16.xpose.msra.mxu0 0
      %1004 = vmatpush.bf16.xpose.msra.mxu0 0
      %1005 = vmatpush.bf16.xpose.msra.mxu0 0
      %1006 = vmatpush.bf16.xpose.msra.mxu0 0
      %1007 = vmatpush.bf16.xpose.msra.mxu0 %v998
      %1008 = vmatmul.bf16.gmra.mxu0 %v995
      %v1009 = vpop.f32.mrf.mxu0
      %v1010 = vadd.f32 %v757, %v1009
      %v1011 = vpop.f32.mrf.mxu0
      %1012 = vdwg.mxu0
      %v1013 = vsel %vm804, %v1010, -inf
      %1014 = vmax.xlane.f32.xlu0 %v1013
      %v1015 = vpop.xlane.xlu0 %1014
      %v1016 = vsub.f32 %v1010, %v1015
      %v1017 = vmul.f32 %v1016, 1.442695
      %v1018 = vpow.pop %v1017
      %v1019 = vsel %vm804, %v1018, 0.0
      %1020 = vadd.xlane.f32.xlu0 %v1019
      %v1021 = vpop.xlane.xlu0 %1020
      %v1022 = vrcp.pop %v1021
      %v1023 = vmul.f32 %v1018, %v1022
      %v1024 = vpack.c.bf16 %v1023, %v1023
      %1025 = vrot.lane.b32.xlu0 %v801, 40
      %v1026 = vpop.permute.xlu0 %1025
      %v1028 = vsel %vm804, %v1024, 0
      %v1031 = vsel %vm841, %v1026, 0
      %1033 = vmatpush.bf16.msra.mxu0 0
      %1034 = vmatpush.bf16.msra.mxu0 0
      %1035 = vmatpush.bf16.msra.mxu0 0
      %1036 = vmatpush.bf16.msra.mxu0 0
      %1037 = vmatpush.bf16.msra.mxu0 0
      %1038 = vmatpush.bf16.msra.mxu0 0
      %1039 = vmatpush.bf16.msra.mxu0 0
      %1040 = vmatpush.bf16.msra.mxu0 %v1031
      %1041 = vmatmul.bf16.gmra.mxu0 %v1028
      %v1042 = vpop.f32.mrf.mxu0
      %v1043 = vadd.f32 0.0, %v1042
      %v1044 = vpop.f32.mrf.mxu0
      %1045 = vdwg.mxu0
      %v1046 = vpack.c.bf16 %v1043, %v1043
      %1048 = vrot.lane.b32.xlu0 %v1046, 24
      %v1049 = vpop.permute.xlu0 %1048
      %vm1051 = vcmask 257216
      %1052 = vst.msk [vmem:[#allocation4] sm:$0xf] %vm1051, %v1049
      %v1053 = vld [vmem:[#allocation4] sm:$0xf]
      %v1054 = vld [vmem:[%s699] sm:$0xf]
      %v1055 = vld [vmem:[%s699 + $0x4] sm:$0xf]
      %v1056 = vld [vmem:[%s699 + $0x8] sm:$0xf]
      %v1057 = vld [vmem:[%s699 + $0xc] sm:$0xf]
      %v1058 = vld [vmem:[%s702] sm:$0x1]
      %v1060 = vperm.slane %v1058, 0
      %v1066 = vunpack.c.l.b16 %v1054
      %v1067 = vunpack.c.l.b16 %v1055
      %v1068 = vunpack.c.l.b16 %v1056
      %v1069 = vunpack.c.l.b16 %v1057
      %v1070 = vpack.c.b16 %v1067, %v1066
      %v1071 = vpack.c.b16 %v1069, %v1068
      %v1075 = vsel %vm779, %v1053, 0
      %1077 = vmatpush.bf16.msra.mxu0 0
      %1078 = vmatpush.bf16.msra.mxu0 0
      %1079 = vmatpush.bf16.msra.mxu0 0
      %1080 = vmatpush.bf16.msra.mxu0 0
      %1081 = vmatpush.bf16.msra.mxu0 0
      %1082 = vmatpush.bf16.msra.mxu0 0
      %1083 = vmatpush.bf16.msra.mxu0 %v1071
      %1084 = vmatpush.bf16.msra.mxu0 %v1070
      %1085 = vmatmul.bf16.gmra.mxu0 %v1075
      %v1086 = vpop.f32.mrf.mxu0
      %v1087 = vadd.f32 %v1060, %v1086
      %v1088 = vpop.f32.mrf.mxu0
      %1089 = vdwg.mxu0
      %v1090 = vadd.f32 %v756, %v1087
      %v1091 = vld [vmem:[%s705] sm:$0x1]
      %v1092 = vld [vmem:[%s708] sm:$0x1]
      %v1093 = vsel %vm779, %v1090, 0.0
      %1094 = vadd.xlane.f32.xlu0 %v1093
      %v1095 = vpop.xlane.xlu0 %1094
      %v1096 = vrcp.pop 32.0
      %v1097 = vmul.f32 32.0, %v1096
      %v1098 = vsub.f32 1.0, %v1097
      %v1099 = vmul.f32 %v1096, %v1098
      %v1100 = vadd.f32 %v1096, %v1099
      %vm1101 = vweird.f32 %v1096
      %v1102 = vsel %vm1101, %v1096, %v1100
      %v1103 = vmul.f32 %v1095, %v1102
      %v1104 = vsub.f32 %v1090, %v1103
      %v1105 = vmul.f32 %v1104, %v1104
      %v1106 = vsel %vm779, %v1105, 0.0
      %1107 = vadd.xlane.f32.xlu0 %v1106
      %v1108 = vpop.xlane.xlu0 %1107
      %v1109 = vmul.f32 %v1108, %v1102
      %v1110 = vadd.f32 %v1109, 1e-05
      %v1111 = vrsqrt.pop %v1110
      %v1112 = vmul.f32 %v1111, %v1110
      %v1113 = vmul.f32 %v1112, %v1111
      %v1114 = vmul.f32 0.5, %v1113
      %v1115 = vsub.f32 1.5, %v1114
      %v1116 = vmul.f32 %v1111, %v1115
      %vm1117 = vweird.f32 %v1110
      %vm1118 = vweird.f32 %v1111
      %vm1119 = vmor %vm1117, %vm1118
      %v1120 = vsel %vm1119, %v1111, %v1116
      %v1121 = vmul.f32 %v1104, %v1120
      %v1123 = vperm.slane %v1091, 0
      %v1125 = vmul.f32 %v1121, %v1123
      %v1127 = vperm.slane %v1092, 0
      %v1129 = vadd.f32 %v1125, %v1127
      %v1130 = vpack.c.bf16 %v1129, %v1129
      %v1131 = vld [vmem:[%s713] sm:$0xf]
      %v1132 = vld [vmem:[%s713 + $0x4] sm:$0xf]
      %v1133 = vld [vmem:[%s713 + $0x8] sm:$0xf]
      %v1134 = vld [vmem:[%s713 + $0xc] sm:$0xf]
      %v1135 = vld [vmem:[%s716] sm:$0x1]
      %v1137 = vperm.slane %v1135, 0
      %v1143 = vunpack.c.l.b16 %v1131
      %v1144 = vunpack.c.l.b16 %v1132
      %v1145 = vunpack.c.l.b16 %v1133
      %v1146 = vunpack.c.l.b16 %v1134
      %v1147 = vpack.c.b16 %v1144, %v1143
      %v1148 = vpack.c.b16 %v1146, %v1145
      %v1152 = vsel %vm779, %v1130, 0
      %1154 = vmatpush.bf16.msra.mxu0 0
      %1155 = vmatpush.bf16.msra.mxu0 0
      %1156 = vmatpush.bf16.msra.mxu0 0
      %1157 = vmatpush.bf16.msra.mxu0 0
      %1158 = vmatpush.bf16.msra.mxu0 0
      %1159 = vmatpush.bf16.msra.mxu0 0
      %1160 = vmatpush.bf16.msra.mxu0 %v1148
      %1161 = vmatpush.bf16.msra.mxu0 %v1147
      %1162 = vmatmul.bf16.gmra.mxu0 %v1152
      %v1163 = vpop.f32.mrf.mxu0
      %v1164 = vadd.f32 %v1137, %v1163
      %v1165 = vpop.f32.mrf.mxu0
      %1166 = vdwg.mxu0
      %v1167 = vxor.u32 %v1164, 2147483648
      %v1168 = vmul.f32 %v1167, 1.442695
      %v1169 = vpow.pop %v1168
      %v1170 = vadd.f32 %v1169, 1.0
      %v1171 = vrcp.pop %v1170
      %v1172 = vmul.f32 %v1170, %v1171
      %v1173 = vsub.f32 1.0, %v1172
      %v1174 = vmul.f32 %v1171, %v1173
      %v1175 = vadd.f32 %v1171, %v1174
      %vm1176 = vweird.f32 %v1170
      %vm1177 = vweird.f32 %v1171
      %vm1178 = vmor %vm1176, %vm1177
      %v1179 = vsel %vm1178, %v1171, %v1175
      %v1180 = vand.u32 2147483647, %v1170
      %vm1181 = vcmp.eq.f32.partialorder %v1180, 8.507059e+37
      %v1182 = vand.u32 %v1170, 2147483648
      %v1183 = vor.u32 1.1754944e-38, %v1182
      %v1184 = vsel %vm1181, %v1183, %v1179
      %v1185 = vmul.f32 1.0, %v1184
      %v1186 = vmul.f32 %v1164, %v1185
      %v1187 = vpack.c.bf16 %v1186, %v1186
      %v1188 = vld [vmem:[%s721] sm:$0xf]
      %v1189 = vld [vmem:[%s721 + $0x4] sm:$0xf]
      %v1190 = vld [vmem:[%s721 + $0x8] sm:$0xf]
      %v1191 = vld [vmem:[%s721 + $0xc] sm:$0xf]
      %v1192 = vld [vmem:[%s724] sm:$0x1]
      %v1194 = vperm.slane %v1192, 0
      %v1200 = vunpack.c.l.b16 %v1188
      %v1201 = vunpack.c.l.b16 %v1189
      %v1202 = vunpack.c.l.b16 %v1190
      %v1203 = vunpack.c.l.b16 %v1191
      %v1204 = vpack.c.b16 %v1201, %v1200
      %v1205 = vpack.c.b16 %v1203, %v1202
      %v1209 = vsel %vm779, %v1187, 0
      %1211 = vmatpush.bf16.msra.mxu0 0
      %1212 = vmatpush.bf16.msra.mxu0 0
      %1213 = vmatpush.bf16.msra.mxu0 0
      %1214 = vmatpush.bf16.msra.mxu0 0
      %1215 = vmatpush.bf16.msra.mxu0 0
      %1216 = vmatpush.bf16.msra.mxu0 0
      %1217 = vmatpush.bf16.msra.mxu0 %v1205
      %1218 = vmatpush.bf16.msra.mxu0 %v1204
      %1219 = vmatmul.bf16.gmra.mxu0 %v1209
      %v1220 = vpop.f32.mrf.mxu0
      %v1221 = vadd.f32 %v1194, %v1220
      %v1222 = vpop.f32.mrf.mxu0
      %1223 = vdwg.mxu0
      %v1224 = vadd.f32 %v1129, %v1221
      %v1225 = vld [vmem:[%s727] sm:$0x1]
      %v1226 = vld [vmem:[%s730] sm:$0x1]
      %v1227 = vsel %vm779, %v1224, 0.0
      %1228 = vadd.xlane.f32.xlu0 %v1227
      %v1229 = vpop.xlane.xlu0 %1228
      %v1230 = vmul.f32 %v1229, %v1102
      %v1231 = vsub.f32 %v1224, %v1230
      %v1232 = vmul.f32 %v1231, %v1231
      %v1233 = vsel %vm779, %v1232, 0.0
      %1234 = vadd.xlane.f32.xlu0 %v1233
      %v1235 = vpop.xlane.xlu0 %1234
      %v1236 = vmul.f32 %v1235, %v1102
      %v1237 = vadd.f32 %v1236, 1e-05
      %v1238 = vrsqrt.pop %v1237
      %v1239 = vmul.f32 %v1238, %v1237
      %v1240 = vmul.f32 %v1239, %v1238
      %v1241 = vmul.f32 0.5, %v1240
      %v1242 = vsub.f32 1.5, %v1241
      %v1243 = vmul.f32 %v1238, %v1242
      %vm1244 = vweird.f32 %v1237
      %vm1245 = vweird.f32 %v1238
      %vm1246 = vmor %vm1244, %vm1245
      %v1247 = vsel %vm1246, %v1238, %v1243
      %v1248 = vmul.f32 %v1231, %v1247
      %v1250 = vperm.slane %v1225, 0
      %v1252 = vmul.f32 %v1248, %v1250
      %v1254 = vperm.slane %v1226, 0
      %v1256 = vadd.f32 %v1252, %v1254
      %1257 = vst.msk [vmem:[#allocation2] sm:$0xff] %vm779, %v1256
      %p1258 = scmp.eq.s32.totalorder %s32, 1
      // Predicated region
      $region89: #{transformer_model_forward.1} parent=83 // pred_check
        %p1259 = pneg %p1258
      $region90: #{transformer_model_forward.1} parent=83 // pred_check_branch
        %1261 = sbr.rel (%p1259) target = $region92
      $region91: #{transformer_model_forward.1} parent=83 // pred_region
        %v1262 = vpack.c.bf16 %v1256, %v1256
        %v1263 = vld [vmem:[%s14] sm:$0xf]
        %v1264 = vld [vmem:[%s14 + $0x4] sm:$0xf]
        %v1265 = vld [vmem:[%s14 + $0x8] sm:$0xf]
        %v1266 = vld [vmem:[%s14 + $0xc] sm:$0xf]
        %v1267 = vld [vmem:[%s15] sm:$0x1]
        %v1269 = vperm.slane %v1267, 0
        %v1275 = vunpack.c.l.b16 %v1263
        %v1276 = vunpack.c.l.b16 %v1264
        %v1277 = vunpack.c.l.b16 %v1265
        %v1278 = vunpack.c.l.b16 %v1266
        %v1279 = vpack.c.b16 %v1276, %v1275
        %v1280 = vpack.c.b16 %v1278, %v1277
        %v1284 = vsel %vm779, %v1262, 0
        %1286 = vmatpush.bf16.msra.mxu0 0
        %1287 = vmatpush.bf16.msra.mxu0 0
        %1288 = vmatpush.bf16.msra.mxu0 0
        %1289 = vmatpush.bf16.msra.mxu0 0
        %1290 = vmatpush.bf16.msra.mxu0 0
        %1291 = vmatpush.bf16.msra.mxu0 0
        %1292 = vmatpush.bf16.msra.mxu0 %v1280
        %1293 = vmatpush.bf16.msra.mxu0 %v1279
        %1294 = vmatmul.bf16.gmra.mxu0 %v1284
        %v1295 = vpop.f32.mrf.mxu0
        %v1296 = vadd.f32 %v1269, %v1295
        %v1297 = vpop.f32.mrf.mxu0
        %1298 = vdwg.mxu0
        %1299 = vst [vmem:[%s734] sm:$0xff] %v1296
      $region92: #{transformer_model_forward.1} parent=83 // pred_fallthru
        _
      %p1300 = scmp.lt.s32.totalorder %s31, 1
      %s1301 = scalar_select %p1300, %s31, 1
      %s1302 = smul.addr %s1301, 8
      %s1303 = scalar_lea.vmem %s16, %s1302
      // Predicated region
      $region93: #{transformer_model_forward.1} parent=83 // pred_check
        %p1304 = pneg %p463
      $region94: #{transformer_model_forward.1} parent=83 // pred_check_branch
        %1306 = sbr.rel (%p1304) target = $region96
      $region95: #{transformer_model_forward.1} parent=83 // pred_region
        _
      $region96: #{transformer_model_forward.1} parent=83 // pred_fallthru
        _
    $region84: #{transformer_model_forward.1} parent=5 // pred_fallthru
      _
    %p1307 = scmp.le.s32.totalorder 2, %s22
    // Predicated region
    $region97: #{transformer_model_forward.1} parent=5 // pred_check
      %p1308 = pneg %p1307
    $region98: #{transformer_model_forward.1} parent=5 // pred_check_branch
      %1310 = sbr.rel (%p1308) target = $region100
    $region99: #{transformer_model_forward.1} parent=5 // pred_region
      %s1311 = ssub.s32 %s22, 2
      // Predicated region
      $region101: #{transformer_model_forward.1} parent=99 // pred_check
        %p1312 = pneg %p469
      $region102: #{transformer_model_forward.1} parent=99 // pred_check_branch
        %1314 = sbr.rel (%p1312) target = $region104
      $region103: #{transformer_model_forward.1} parent=99 // pred_region
        %p1315 = scmp.lt.s32.totalorder %s33, 1
        %s1316 = scalar_select %p1315, %s33, 1
        %s1317 = smul.addr %s1316, 8
        %s1318 = scalar_lea.vmem %s16, %s1317
      $region104: #{transformer_model_forward.1} parent=99 // pred_fallthru
        _
    $region100: #{transformer_model_forward.1} parent=5 // pred_fallthru
      _
  $region6: #{transformer_model_forward.1} parent=0 // loop_footer
    %s26 = sadd.s32 1, %s22
  $region7: #{transformer_model_forward.1} parent=0 // loop_footer_branch
    %21 = sbr.rel target = $region3
  $region8: #{transformer_model_forward.1} parent=0 // loop_exit
    _

</llo_original>
